<compile_context>
chip_gen: v7x
topology: tpu7x:2x2x1
jax: 0.10.0
libtpu: 0.0.40
codegen_flags: <defaults>
</compile_context>

<pallas_src>
import math

import jax
import jax.numpy as jnp
import numpy as np
from jax import lax
from jax.experimental import pallas as pl
from jax.experimental.pallas import tpu as pltpu

_TWO_PI = 2.0 * math.pi
_TWO_PI_SQ = 2.0 * math.pi ** 2
_RS = 8  # in-kernel row sub-chunk (one f32 sublane group) -> bounded vreg pressure


def _round_up(x, m):
    return -(-x // m) * m


# -----------------------------------------------------------------------------
# Pallas kernels: one (tm, tn) tile of the separable spectral-mixture Gram matrix
#   K[i, j] = prod_d  sum_m  w[m,d] * exp(-2*pi^2 * tau^2 * var[m,d])
#                                   * cos( 2*pi   * tau   * mu [m,d])
# with tau = X[i,d] - X[j,d].  The cosine is expanded with angle addition using
# per-point cos/sin factors (weights folded into the row side):
#   w*cos(th_i - th_j) = (w*cos th_i)*cos th_j + (w*sin th_i)*sin th_j .
# Only tiles touching the upper triangle are visited (compacted 1-D grid); the
# lower triangle is filled by a single mirror pass in the wrapper.  epsilon*I is
# added in-kernel on diagonal elements.
# -----------------------------------------------------------------------------
def _sm_gram_tile_kernel(bi_ref, bj_ref, a_ref, eps_ref, xi_ref, xjt_ref,
                         cwi_ref, swi_ref, cjt_ref, sjt_ref, o_ref):
    tm, D = xi_ref.shape          # row tile of X            : (tm, D)    VMEM
    tn = xjt_ref.shape[1]         # column tile of X^T       : (D, tn)    VMEM
    MD = cjt_ref.shape[0]         # mixtures*dims (cjt is (M*D, tn))
    M = MD // D
    t = pl.program_id(0)
    row0 = bi_ref[t] * tm
    col0 = bj_ref[t] * tn
    eps = eps_ref[0]

    col_ids = lax.broadcasted_iota(jnp.int32, (_RS, tn), 1) + col0
    row_loc = lax.broadcasted_iota(jnp.int32, (_RS, tn), 0)

    def row_chunk(r, carry):
        r0 = pl.multiple_of(r * _RS, _RS)
        acc = None
        for d in range(D):                                        # static unroll
            tau = xi_ref[pl.ds(r0, _RS), d:d + 1] - xjt_ref[d:d + 1, :]   # (_RS, tn)
            tau2 = tau * tau
            per_dim = None
            for m in range(M):                                    # static unroll
                md = m * D + d
                radial = jnp.exp(a_ref[md] * tau2)                            # EUP
                angular = (cwi_ref[pl.ds(r0, _RS), md:md + 1] * cjt_ref[md:md + 1, :]
                           + swi_ref[pl.ds(r0, _RS), md:md + 1] * sjt_ref[md:md + 1, :])
                term = radial * angular
                per_dim = term if per_dim is None else per_dim + term
            acc = per_dim if acc is None else acc * per_dim       # product over dims
        # epsilon on the diagonal (mask only hits diagonal-straddling tiles)
        is_diag = (row_loc + (row0 + r0)) == col_ids
        acc = jnp.where(is_diag, acc + eps, acc)
        o_ref[pl.ds(r0, _RS), :] = acc
        return carry

    lax.fori_loop(0, tm // _RS, row_chunk, 0)


def _sm_gram_tile_kernel_nomu(bi_ref, bj_ref, a_ref, w_ref, eps_ref,
                              xi_ref, xjt_ref, o_ref):
    # is_no_mu specialization: cosine factor is identically 1 -> no per-point
    # cos/sin inputs and no angular VPU work at all.
    tm, D = xi_ref.shape
    tn = xjt_ref.shape[1]
    MD = a_ref.shape[0]
    M = MD // D
    t = pl.program_id(0)
    row0 = bi_ref[t] * tm
    col0 = bj_ref[t] * tn
    eps = eps_ref[0]

    col_ids = lax.broadcasted_iota(jnp.int32, (_RS, tn), 1) + col0
    row_loc = lax.broadcasted_iota(jnp.int32, (_RS, tn), 0)

    def row_chunk(r, carry):
        r0 = pl.multiple_of(r * _RS, _RS)
        acc = None
        for d in range(D):
            tau = xi_ref[pl.ds(r0, _RS), d:d + 1] - xjt_ref[d:d + 1, :]
            tau2 = tau * tau
            per_dim = None
            for m in range(M):
                md = m * D + d
                term = w_ref[md] * jnp.exp(a_ref[md] * tau2)
                per_dim = term if per_dim is None else per_dim + term
            acc = per_dim if acc is None else acc * per_dim
        is_diag = (row_loc + (row0 + r0)) == col_ids
        acc = jnp.where(is_diag, acc + eps, acc)
        o_ref[pl.ds(r0, _RS), :] = acc
        return carry

    lax.fori_loop(0, tm // _RS, row_chunk, 0)


# -----------------------------------------------------------------------------
# Wrapper: rectangular padding, per-point factor precompute, compacted upper-
# triangular tile grid (scalar-prefetched tile tables), single-pass mirror.
# -----------------------------------------------------------------------------
def spectral_mixture_gram(X, mu, var, weights, epsilon, *, is_no_mu=False,
                          tm=256, tn=512):
    """Returns K(X, X) + epsilon*I as an (N, N) float32 matrix."""
    X = jnp.asarray(X, jnp.float32)
    N, D = X.shape
    M = var.shape[0]
    MD = M * D

    # Tile shapes: rows multiple of 8 (sublane), cols multiple of 128 (lane),
    # clamped so small problems don't over-pad or over-allocate.
    tm = _round_up(max(_RS, min(tm, _round_up(N, _RS))), _RS)
    tn = _round_up(max(128, min(tn, _round_up(N, 128))), 128)

    # Rectangular padding (rows / cols padded independently; no lcm blow-up).
    Nr = _round_up(N, tm)
    Nc = _round_up(N, tn)
    Nmax = max(Nr, Nc)
    Xp = jnp.pad(X, ((0, Nmax - N), (0, 0))) if Nmax > N else X
    X_rows = Xp[:Nr]                    # (Nr, D)  row-side points
    Xt = Xp[:Nc].T                      # (D, Nc)  lane-dense column-side points

    # Combined per-(m,d) scalar for the radial factor: exp(a*tau^2), a = -2*pi^2*var
    a = (-_TWO_PI_SQ * var).astype(jnp.float32).reshape(MD)       # index m*D + d
    eps = jnp.full((1,), epsilon, jnp.float32)

    # Compacted 1-D grid over only the tiles that touch the upper triangle.
    # Column-block-major order -> large column-side blocks stay resident across
    # consecutive steps; equal work per tile -> balanced megacore split on v7x.
    n_i, n_j = Nr // tm, Nc // tn
    bi_list, bj_list = [], []
    for j in range(n_j):
        for i in range(n_i):
            if i * tm < (j + 1) * tn:          # tile not strictly below diagonal
                bi_list.append(i)
                bj_list.append(j)
    bi_tab = jnp.asarray(np.asarray(bi_list, np.int32))
    bj_tab = jnp.asarray(np.asarray(bj_list, np.int32))
    T = len(bi_list)

    out_shape = jax.ShapeDtypeStruct((Nr, Nc), jnp.float32)
    params = pltpu.CompilerParams(dimension_semantics=("parallel",))
    smem = pl.BlockSpec(memory_space=pltpu.MemorySpace.SMEM)

    if is_no_mu:
        w_flat = weights.astype(jnp.float32).reshape(MD)
        grid_spec = pltpu.PrefetchScalarGridSpec(
            num_scalar_prefetch=2, grid=(T,),
            in_specs=[
                smem, smem, smem,                                     # a, w, eps
                pl.BlockSpec((tm, D), lambda t, bi, bj: (bi[t], 0)),  # X rows tile
                pl.BlockSpec((D, tn), lambda t, bi, bj: (0, bj[t])),  # X^T col tile
            ],
            out_specs=pl.BlockSpec((tm, tn), lambda t, bi, bj: (bi[t], bj[t])),
        )
        K = pl.pallas_call(_sm_gram_tile_kernel_nomu, out_shape=out_shape,
                           grid_spec=grid_spec, compiler_params=params)(
            bi_tab, bj_tab, a, w_flat, eps, X_rows, Xt)
    else:
        # Per-point angle factors (O(N*M*D) precompute, tiny vs O(N^2*M*D) kernel).
        theta = _TWO_PI * Xp[:, None, :] * mu[None, :, :]             # (Nmax, M, D)
        c = jnp.cos(theta).reshape(Nmax, MD)
        s = jnp.sin(theta).reshape(Nmax, MD)
        w_row = weights.astype(jnp.float32).reshape(1, MD)
        cw = (w_row * c)[:Nr]                                         # row side (w folded)
        sw = (w_row * s)[:Nr]
        ct = c[:Nc].T                                                 # (MD, Nc) column side
        st = s[:Nc].T
        grid_spec = pltpu.PrefetchScalarGridSpec(
            num_scalar_prefetch=2, grid=(T,),
            in_specs=[
                smem, smem,                                           # a, eps
                pl.BlockSpec((tm, D), lambda t, bi, bj: (bi[t], 0)),  # X rows tile
                pl.BlockSpec((D, tn), lambda t, bi, bj: (0, bj[t])),  # X^T col tile
                pl.BlockSpec((tm, MD), lambda t, bi, bj: (bi[t], 0)), # w*cos rows
                pl.BlockSpec((tm, MD), lambda t, bi, bj: (bi[t], 0)), # w*sin rows
                pl.BlockSpec((MD, tn), lambda t, bi, bj: (0, bj[t])), # cos^T cols
                pl.BlockSpec((MD, tn), lambda t, bi, bj: (0, bj[t])), # sin^T cols
            ],
            out_specs=pl.BlockSpec((tm, tn), lambda t, bi, bj: (bi[t], bj[t])),
        )
        K = pl.pallas_call(_sm_gram_tile_kernel, out_shape=out_shape,
                           grid_spec=grid_spec, compiler_params=params)(
            bi_tab, bj_tab, a, eps, X_rows, Xt, cw, sw, ct, st)

    # Keep the computed upper triangle (incl. in-kernel epsilon on the diagonal),
    # mirror to the lower triangle in a single fused pass.  Unvisited lower tiles
    # contain uninitialized data and are never read arithmetically (select only).
    K = K[:N, :N]
    idx = jnp.arange(N)
    return jnp.where(idx[:, None] <= idx[None, :], K, K.T)


# -----------------------------------------------------------------------------
# Glue: marginal likelihood (Cholesky) + module-equivalent parameter handling.
# -----------------------------------------------------------------------------
def _marg_likelihood_from_gram(K_jittered, y):
    # TODO(synk): Cholesky / triangular solves are inherently sequential — kept in
    # plain JAX (XLA) rather than faking a Pallas implementation.
    n = y.shape[0]
    L = lax.linalg.cholesky(K_jittered, symmetrize_input=False)
    alpha = jax.scipy.linalg.cho_solve((L, True), y)
    quad = 0.5 * jnp.sum(y * alpha)
    logdet = jnp.sum(jnp.log(jnp.diagonal(L)))
    return -quad - logdet - 0.5 * n * jnp.log(2.0 * jnp.pi)


class GPMLL_SM:
    """JAX/Pallas port of the PyTorch GPMLL_SM module (cold-start init path)."""

    def __init__(self, num_mix, input_dim, *, is_no_mu=False, is_dim_diff=True,
                 key=jax.random.PRNGKey(0)):
        self.is_no_mu = is_no_mu
        kernel_dim = input_dim if is_dim_diff else 1
        k1, k2, k3 = jax.random.split(key, 3)
        if not is_no_mu:
            self.mu = jax.random.normal(k1, (num_mix, kernel_dim), jnp.float32)
        self.var = jax.random.normal(k2, (num_mix, kernel_dim), jnp.float32)
        self.weights = jax.random.normal(k3, (num_mix, kernel_dim), jnp.float32)

    def forward(self, X, y, epsilon, *, tm=256, tn=512):
        N, D = X.shape
        M = self.var.shape[0]

        var = jnp.exp(jnp.clip(self.var, -20.0, 20.0))
        weights = jax.nn.softmax(jnp.clip(self.weights, -20.0, 20.0), axis=-2) * 2.0
        var = jnp.broadcast_to(var, (M, D)).astype(jnp.float32)
        weights = jnp.broadcast_to(weights, (M, D)).astype(jnp.float32)
        if self.is_no_mu:
            mu = jnp.zeros((M, D), jnp.float32)   # cosine factor identically 1
        else:
            mu = jnp.exp(jnp.clip(self.mu, -20.0, 20.0))
            mu = jnp.broadcast_to(mu, (M, D)).astype(jnp.float32)

        K = spectral_mixture_gram(X, mu, var, weights, epsilon,
                                  is_no_mu=self.is_no_mu, tm=tm, tn=tn)
        nmll = -_marg_likelihood_from_gram(K, y)
        return nmll, (K, mu, var, weights)


# -----------------------------------------------------------------------------
# Pure-JAX reference of the Gram matrix (sanity check of the Pallas kernel).
# -----------------------------------------------------------------------------
def _gram_reference(X, mu, var, weights, epsilon):
    tau = X[:, None, :] - X[None, :, :]            # (N, N, D)
    tau = tau[:, :, None, :]                       # (N, N, 1, D)
    k = weights * jnp.exp(-_TWO_PI_SQ * tau ** 2 * var) * jnp.cos(_TWO_PI * tau * mu)
    K = k.sum(axis=2).prod(axis=-1)                # (N, N)
    return K + epsilon * jnp.eye(X.shape[0], dtype=jnp.float32)


if __name__ == "__main__":
    # Small, module-consistent shapes: N data points, D input dims, M mixtures.
    N, D, M = 256, 4, 8
    epsilon = 0.1

    key = jax.random.PRNGKey(0)
    kx, ky, kp1, kp2 = jax.random.split(key, 4)
    X = jax.random.normal(kx, (N, D), jnp.float32)
    y = jax.random.normal(ky, (N, 1), jnp.float32)

    # ---- full spectral-mixture path (with mu), single-tile grid --------------
    model = GPMLL_SM(num_mix=M, input_dim=D, is_no_mu=False, is_dim_diff=True, key=kp1)
    nmll, (K, mu, var, weights) = model.forward(X, y, epsilon)
    nmll = jax.block_until_ready(nmll)

    K_ref = _gram_reference(X, mu, var, weights, epsilon)
    # angle-addition expansion changes rounding slightly vs. the direct cosine
    np.testing.assert_allclose(np.asarray(K), np.asarray(K_ref), rtol=5e-3, atol=5e-3)
    assert np.isfinite(float(nmll))

    # ---- multi-tile compacted upper-triangle grid + mirror path ---------------
    K_tiled = spectral_mixture_gram(X, mu, var, weights, epsilon, tm=64, tn=128)
    K_tiled = jax.block_until_ready(K_tiled)
    np.testing.assert_allclose(np.asarray(K_tiled), np.asarray(K_ref),
                               rtol=5e-3, atol=5e-3)

    # ---- non-multiple N (rectangular padding path) ----------------------------
    N2 = 200
    X2 = X[:N2]
    K2 = spectral_mixture_gram(X2, mu, var, weights, epsilon, tm=64, tn=128)
    K2 = jax.block_until_ready(K2)
    K2_ref = _gram_reference(X2, mu, var, weights, epsilon)
    np.testing.assert_allclose(np.asarray(K2), np.asarray(K2_ref),
                               rtol=5e-3, atol=5e-3)

    # ---- is_no_mu specialization (no cosine factor at all) --------------------
    model_nm = GPMLL_SM(num_mix=M, input_dim=D, is_no_mu=True, is_dim_diff=True, key=kp2)
    nmll_nm, (K_nm, mu_nm, var_nm, w_nm) = model_nm.forward(X, y, epsilon)
    nmll_nm = jax.block_until_ready(nmll_nm)
    K_nm_ref = _gram_reference(X, jnp.zeros_like(var_nm), var_nm, w_nm, epsilon)
    np.testing.assert_allclose(np.asarray(K_nm), np.asarray(K_nm_ref),
                               rtol=1e-4, atol=1e-4)
    assert np.isfinite(float(nmll_nm))

    print("KERNEL_OK")
</pallas_src>

<mosaic_0001>
module attributes {stable_mosaic.version = 11 : i64} {
  func.func @_sm_gram_tile_kernel(%arg0: i32, %arg1: memref<1xi32, #tpu.memory_space<smem>>, %arg2: memref<1xi32, #tpu.memory_space<smem>>, %arg3: memref<32xf32, #tpu.memory_space<smem>>, %arg4: memref<1xf32, #tpu.memory_space<smem>>, %arg5: memref<256x4xf32, #tpu.memory_space<vmem>>, %arg6: memref<4x256xf32, #tpu.memory_space<vmem>>, %arg7: memref<256x32xf32, #tpu.memory_space<vmem>>, %arg8: memref<256x32xf32, #tpu.memory_space<vmem>>, %arg9: memref<32x256xf32, #tpu.memory_space<vmem>>, %arg10: memref<32x256xf32, #tpu.memory_space<vmem>>, %arg11: memref<256x256xf32, #tpu.memory_space<vmem>>) attributes {dimension_semantics = [#tpu.dimension_semantics<parallel>], iteration_bounds = array<i64: 1>, scalar_prefetch = 2 : i64, scratch_operands = 0 : i64, tpu.core_type = #tpu.core_type<tc>, window_params = [{transform_indices = @transform_0, window_bounds = array<i64: 32>}, {transform_indices = @transform_1, window_bounds = array<i64: 1>}, {transform_indices = @transform_2, window_bounds = array<i64: 256, 4>}, {transform_indices = @transform_3, window_bounds = array<i64: 4, 256>}, {transform_indices = @transform_4, window_bounds = array<i64: 256, 32>}, {transform_indices = @transform_5, window_bounds = array<i64: 256, 32>}, {transform_indices = @transform_6, window_bounds = array<i64: 32, 256>}, {transform_indices = @transform_7, window_bounds = array<i64: 32, 256>}, {transform_indices = @transform_8, window_bounds = array<i64: 256, 256>}]} {
    %0 = arith.index_cast %arg0 : i32 to index
    %1 = memref.load %arg1[%0] : memref<1xi32, #tpu.memory_space<smem>>
    %c256_i32 = arith.constant 256 : i32
    %2 = arith.muli %1, %c256_i32 : i32
    %3 = arith.index_cast %arg0 : i32 to index
    %4 = memref.load %arg2[%3] : memref<1xi32, #tpu.memory_space<smem>>
    %c256_i32_0 = arith.constant 256 : i32
    %5 = arith.muli %4, %c256_i32_0 : i32
    %c0 = arith.constant 0 : index
    %6 = memref.load %arg4[%c0] : memref<1xf32, #tpu.memory_space<smem>>
    %7 = tpu.iota {dimensions = array<i32: 1>} : vector<8x256xi32>
    %8 = vector.broadcast %5 : i32 to vector<8x256xi32>
    %9 = arith.addi %7, %8 : vector<8x256xi32>
    %10 = tpu.iota {dimensions = array<i32: 0>} : vector<8x256xi32>
    %c0_i32 = arith.constant 0 : i32
    %c32_i32 = arith.constant 32 : i32
    %11 = arith.addi %c0_i32, %c32_i32 : i32
    %c1_i32 = arith.constant 1 : i32
    scf.for %arg12 = %c0_i32 to %11 step %c1_i32  : i32 {
      %c8_i32 = arith.constant 8 : i32
      %12 = arith.muli %arg12, %c8_i32 : i32
      %13 = tpu.assume_multiple %12, 8 : i32
      %14 = arith.index_cast %13 : i32 to index
      %c0_2 = arith.constant 0 : index
      %15 = vector.load %arg5[%14, %c0_2] : memref<256x4xf32, #tpu.memory_space<vmem>>, vector<8x1xf32>
      %c0_3 = arith.constant 0 : index
      %c0_4 = arith.constant 0 : index
      %16 = vector.load %arg6[%c0_3, %c0_4] : memref<4x256xf32, #tpu.memory_space<vmem>>, vector<1x256xf32>
      %17 = vector.broadcast %15 : vector<8x1xf32> to vector<8x256xf32>
      %18 = vector.broadcast %16 : vector<1x256xf32> to vector<8x256xf32>
      %19 = arith.subf %17, %18 : vector<8x256xf32>
      %20 = arith.mulf %19, %19 : vector<8x256xf32>
      %c0_5 = arith.constant 0 : index
      %21 = memref.load %arg3[%c0_5] : memref<32xf32, #tpu.memory_space<smem>>
      %22 = vector.broadcast %21 : f32 to vector<8x256xf32>
      %23 = arith.mulf %22, %20 : vector<8x256xf32>
      %24 = math.exp %23 : vector<8x256xf32>
      %25 = arith.index_cast %13 : i32 to index
      %c0_6 = arith.constant 0 : index
      %26 = vector.load %arg7[%25, %c0_6] : memref<256x32xf32, #tpu.memory_space<vmem>>, vector<8x1xf32>
      %c0_7 = arith.constant 0 : index
      %c0_8 = arith.constant 0 : index
      %27 = vector.load %arg9[%c0_7, %c0_8] : memref<32x256xf32, #tpu.memory_space<vmem>>, vector<1x256xf32>
      %28 = vector.broadcast %26 : vector<8x1xf32> to vector<8x256xf32>
      %29 = vector.broadcast %27 : vector<1x256xf32> to vector<8x256xf32>
      %30 = arith.mulf %28, %29 : vector<8x256xf32>
      %31 = arith.index_cast %13 : i32 to index
      %c0_9 = arith.constant 0 : index
      %32 = vector.load %arg8[%31, %c0_9] : memref<256x32xf32, #tpu.memory_space<vmem>>, vector<8x1xf32>
      %c0_10 = arith.constant 0 : index
      %c0_11 = arith.constant 0 : index
      %33 = vector.load %arg10[%c0_10, %c0_11] : memref<32x256xf32, #tpu.memory_space<vmem>>, vector<1x256xf32>
      %34 = vector.broadcast %32 : vector<8x1xf32> to vector<8x256xf32>
      %35 = vector.broadcast %33 : vector<1x256xf32> to vector<8x256xf32>
      %36 = arith.mulf %34, %35 : vector<8x256xf32>
      %37 = arith.addf %30, %36 : vector<8x256xf32>
      %38 = arith.mulf %24, %37 : vector<8x256xf32>
      %c4 = arith.constant 4 : index
      %39 = memref.load %arg3[%c4] : memref<32xf32, #tpu.memory_space<smem>>
      %40 = vector.broadcast %39 : f32 to vector<8x256xf32>
      %41 = arith.mulf %40, %20 : vector<8x256xf32>
      %42 = math.exp %41 : vector<8x256xf32>
      %43 = arith.index_cast %13 : i32 to index
      %c4_12 = arith.constant 4 : index
      %44 = vector.load %arg7[%43, %c4_12] : memref<256x32xf32, #tpu.memory_space<vmem>>, vector<8x1xf32>
      %c4_13 = arith.constant 4 : index
      %c0_14 = arith.constant 0 : index
      %45 = vector.load %arg9[%c4_13, %c0_14] : memref<32x256xf32, #tpu.memory_space<vmem>>, vector<1x256xf32>
      %46 = vector.broadcast %44 : vector<8x1xf32> to vector<8x256xf32>
      %47 = vector.broadcast %45 : vector<1x256xf32> to vector<8x256xf32>
      %48 = arith.mulf %46, %47 : vector<8x256xf32>
      %49 = arith.index_cast %13 : i32 to index
      %c4_15 = arith.constant 4 : index
      %50 = vector.load %arg8[%49, %c4_15] : memref<256x32xf32, #tpu.memory_space<vmem>>, vector<8x1xf32>
      %c4_16 = arith.constant 4 : index
      %c0_17 = arith.constant 0 : index
      %51 = vector.load %arg10[%c4_16, %c0_17] : memref<32x256xf32, #tpu.memory_space<vmem>>, vector<1x256xf32>
      %52 = vector.broadcast %50 : vector<8x1xf32> to vector<8x256xf32>
      %53 = vector.broadcast %51 : vector<1x256xf32> to vector<8x256xf32>
      %54 = arith.mulf %52, %53 : vector<8x256xf32>
      %55 = arith.addf %48, %54 : vector<8x256xf32>
      %56 = arith.mulf %42, %55 : vector<8x256xf32>
      %57 = arith.addf %38, %56 : vector<8x256xf32>
      %c8 = arith.constant 8 : index
      %58 = memref.load %arg3[%c8] : memref<32xf32, #tpu.memory_space<smem>>
      %59 = vector.broadcast %58 : f32 to vector<8x256xf32>
      %60 = arith.mulf %59, %20 : vector<8x256xf32>
      %61 = math.exp %60 : vector<8x256xf32>
      %62 = arith.index_cast %13 : i32 to index
      %c8_18 = arith.constant 8 : index
      %63 = vector.load %arg7[%62, %c8_18] : memref<256x32xf32, #tpu.memory_space<vmem>>, vector<8x1xf32>
      %c8_19 = arith.constant 8 : index
      %c0_20 = arith.constant 0 : index
      %64 = vector.load %arg9[%c8_19, %c0_20] : memref<32x256xf32, #tpu.memory_space<vmem>>, vector<1x256xf32>
      %65 = vector.broadcast %63 : vector<8x1xf32> to vector<8x256xf32>
      %66 = vector.broadcast %64 : vector<1x256xf32> to vector<8x256xf32>
      %67 = arith.mulf %65, %66 : vector<8x256xf32>
      %68 = arith.index_cast %13 : i32 to index
      %c8_21 = arith.constant 8 : index
      %69 = vector.load %arg8[%68, %c8_21] : memref<256x32xf32, #tpu.memory_space<vmem>>, vector<8x1xf32>
      %c8_22 = arith.constant 8 : index
      %c0_23 = arith.constant 0 : index
      %70 = vector.load %arg10[%c8_22, %c0_23] : memref<32x256xf32, #tpu.memory_space<vmem>>, vector<1x256xf32>
      %71 = vector.broadcast %69 : vector<8x1xf32> to vector<8x256xf32>
      %72 = vector.broadcast %70 : vector<1x256xf32> to vector<8x256xf32>
      %73 = arith.mulf %71, %72 : vector<8x256xf32>
      %74 = arith.addf %67, %73 : vector<8x256xf32>
      %75 = arith.mulf %61, %74 : vector<8x256xf32>
      %76 = arith.addf %57, %75 : vector<8x256xf32>
      %c12 = arith.constant 12 : index
      %77 = memref.load %arg3[%c12] : memref<32xf32, #tpu.memory_space<smem>>
      %78 = vector.broadcast %77 : f32 to vector<8x256xf32>
      %79 = arith.mulf %78, %20 : vector<8x256xf32>
      %80 = math.exp %79 : vector<8x256xf32>
      %81 = arith.index_cast %13 : i32 to index
      %c12_24 = arith.constant 12 : index
      %82 = vector.load %arg7[%81, %c12_24] : memref<256x32xf32, #tpu.memory_space<vmem>>, vector<8x1xf32>
      %c12_25 = arith.constant 12 : index
      %c0_26 = arith.constant 0 : index
      %83 = vector.load %arg9[%c12_25, %c0_26] : memref<32x256xf32, #tpu.memory_space<vmem>>, vector<1x256xf32>
      %84 = vector.broadcast %82 : vector<8x1xf32> to vector<8x256xf32>
      %85 = vector.broadcast %83 : vector<1x256xf32> to vector<8x256xf32>
      %86 = arith.mulf %84, %85 : vector<8x256xf32>
      %87 = arith.index_cast %13 : i32 to index
      %c12_27 = arith.constant 12 : index
      %88 = vector.load %arg8[%87, %c12_27] : memref<256x32xf32, #tpu.memory_space<vmem>>, vector<8x1xf32>
      %c12_28 = arith.constant 12 : index
      %c0_29 = arith.constant 0 : index
      %89 = vector.load %arg10[%c12_28, %c0_29] : memref<32x256xf32, #tpu.memory_space<vmem>>, vector<1x256xf32>
      %90 = vector.broadcast %88 : vector<8x1xf32> to vector<8x256xf32>
      %91 = vector.broadcast %89 : vector<1x256xf32> to vector<8x256xf32>
      %92 = arith.mulf %90, %91 : vector<8x256xf32>
      %93 = arith.addf %86, %92 : vector<8x256xf32>
      %94 = arith.mulf %80, %93 : vector<8x256xf32>
      %95 = arith.addf %76, %94 : vector<8x256xf32>
      %c16 = arith.constant 16 : index
      %96 = memref.load %arg3[%c16] : memref<32xf32, #tpu.memory_space<smem>>
      %97 = vector.broadcast %96 : f32 to vector<8x256xf32>
      %98 = arith.mulf %97, %20 : vector<8x256xf32>
      %99 = math.exp %98 : vector<8x256xf32>
      %100 = arith.index_cast %13 : i32 to index
      %c16_30 = arith.constant 16 : index
      %101 = vector.load %arg7[%100, %c16_30] : memref<256x32xf32, #tpu.memory_space<vmem>>, vector<8x1xf32>
      %c16_31 = arith.constant 16 : index
      %c0_32 = arith.constant 0 : index
      %102 = vector.load %arg9[%c16_31, %c0_32] : memref<32x256xf32, #tpu.memory_space<vmem>>, vector<1x256xf32>
      %103 = vector.broadcast %101 : vector<8x1xf32> to vector<8x256xf32>
      %104 = vector.broadcast %102 : vector<1x256xf32> to vector<8x256xf32>
      %105 = arith.mulf %103, %104 : vector<8x256xf32>
      %106 = arith.index_cast %13 : i32 to index
      %c16_33 = arith.constant 16 : index
      %107 = vector.load %arg8[%106, %c16_33] : memref<256x32xf32, #tpu.memory_space<vmem>>, vector<8x1xf32>
      %c16_34 = arith.constant 16 : index
      %c0_35 = arith.constant 0 : index
      %108 = vector.load %arg10[%c16_34, %c0_35] : memref<32x256xf32, #tpu.memory_space<vmem>>, vector<1x256xf32>
      %109 = vector.broadcast %107 : vector<8x1xf32> to vector<8x256xf32>
      %110 = vector.broadcast %108 : vector<1x256xf32> to vector<8x256xf32>
      %111 = arith.mulf %109, %110 : vector<8x256xf32>
      %112 = arith.addf %105, %111 : vector<8x256xf32>
      %113 = arith.mulf %99, %112 : vector<8x256xf32>
      %114 = arith.addf %95, %113 : vector<8x256xf32>
      %c20 = arith.constant 20 : index
      %115 = memref.load %arg3[%c20] : memref<32xf32, #tpu.memory_space<smem>>
      %116 = vector.broadcast %115 : f32 to vector<8x256xf32>
      %117 = arith.mulf %116, %20 : vector<8x256xf32>
      %118 = math.exp %117 : vector<8x256xf32>
      %119 = arith.index_cast %13 : i32 to index
      %c20_36 = arith.constant 20 : index
      %120 = vector.load %arg7[%119, %c20_36] : memref<256x32xf32, #tpu.memory_space<vmem>>, vector<8x1xf32>
      %c20_37 = arith.constant 20 : index
      %c0_38 = arith.constant 0 : index
      %121 = vector.load %arg9[%c20_37, %c0_38] : memref<32x256xf32, #tpu.memory_space<vmem>>, vector<1x256xf32>
      %122 = vector.broadcast %120 : vector<8x1xf32> to vector<8x256xf32>
      %123 = vector.broadcast %121 : vector<1x256xf32> to vector<8x256xf32>
      %124 = arith.mulf %122, %123 : vector<8x256xf32>
      %125 = arith.index_cast %13 : i32 to index
      %c20_39 = arith.constant 20 : index
      %126 = vector.load %arg8[%125, %c20_39] : memref<256x32xf32, #tpu.memory_space<vmem>>, vector<8x1xf32>
      %c20_40 = arith.constant 20 : index
      %c0_41 = arith.constant 0 : index
      %127 = vector.load %arg10[%c20_40, %c0_41] : memref<32x256xf32, #tpu.memory_space<vmem>>, vector<1x256xf32>
      %128 = vector.broadcast %126 : vector<8x1xf32> to vector<8x256xf32>
      %129 = vector.broadcast %127 : vector<1x256xf32> to vector<8x256xf32>
      %130 = arith.mulf %128, %129 : vector<8x256xf32>
      %131 = arith.addf %124, %130 : vector<8x256xf32>
      %132 = arith.mulf %118, %131 : vector<8x256xf32>
      %133 = arith.addf %114, %132 : vector<8x256xf32>
      %c24 = arith.constant 24 : index
      %134 = memref.load %arg3[%c24] : memref<32xf32, #tpu.memory_space<smem>>
      %135 = vector.broadcast %134 : f32 to vector<8x256xf32>
      %136 = arith.mulf %135, %20 : vector<8x256xf32>
      %137 = math.exp %136 : vector<8x256xf32>
      %138 = arith.index_cast %13 : i32 to index
      %c24_42 = arith.constant 24 : index
      %139 = vector.load %arg7[%138, %c24_42] : memref<256x32xf32, #tpu.memory_space<vmem>>, vector<8x1xf32>
      %c24_43 = arith.constant 24 : index
      %c0_44 = arith.constant 0 : index
      %140 = vector.load %arg9[%c24_43, %c0_44] : memref<32x256xf32, #tpu.memory_space<vmem>>, vector<1x256xf32>
      %141 = vector.broadcast %139 : vector<8x1xf32> to vector<8x256xf32>
      %142 = vector.broadcast %140 : vector<1x256xf32> to vector<8x256xf32>
      %143 = arith.mulf %141, %142 : vector<8x256xf32>
      %144 = arith.index_cast %13 : i32 to index
      %c24_45 = arith.constant 24 : index
      %145 = vector.load %arg8[%144, %c24_45] : memref<256x32xf32, #tpu.memory_space<vmem>>, vector<8x1xf32>
      %c24_46 = arith.constant 24 : index
      %c0_47 = arith.constant 0 : index
      %146 = vector.load %arg10[%c24_46, %c0_47] : memref<32x256xf32, #tpu.memory_space<vmem>>, vector<1x256xf32>
      %147 = vector.broadcast %145 : vector<8x1xf32> to vector<8x256xf32>
      %148 = vector.broadcast %146 : vector<1x256xf32> to vector<8x256xf32>
      %149 = arith.mulf %147, %148 : vector<8x256xf32>
      %150 = arith.addf %143, %149 : vector<8x256xf32>
      %151 = arith.mulf %137, %150 : vector<8x256xf32>
      %152 = arith.addf %133, %151 : vector<8x256xf32>
      %c28 = arith.constant 28 : index
      %153 = memref.load %arg3[%c28] : memref<32xf32, #tpu.memory_space<smem>>
      %154 = vector.broadcast %153 : f32 to vector<8x256xf32>
      %155 = arith.mulf %154, %20 : vector<8x256xf32>
      %156 = math.exp %155 : vector<8x256xf32>
      %157 = arith.index_cast %13 : i32 to index
      %c28_48 = arith.constant 28 : index
      %158 = vector.load %arg7[%157, %c28_48] : memref<256x32xf32, #tpu.memory_space<vmem>>, vector<8x1xf32>
      %c28_49 = arith.constant 28 : index
      %c0_50 = arith.constant 0 : index
      %159 = vector.load %arg9[%c28_49, %c0_50] : memref<32x256xf32, #tpu.memory_space<vmem>>, vector<1x256xf32>
      %160 = vector.broadcast %158 : vector<8x1xf32> to vector<8x256xf32>
      %161 = vector.broadcast %159 : vector<1x256xf32> to vector<8x256xf32>
      %162 = arith.mulf %160, %161 : vector<8x256xf32>
      %163 = arith.index_cast %13 : i32 to index
      %c28_51 = arith.constant 28 : index
      %164 = vector.load %arg8[%163, %c28_51] : memref<256x32xf32, #tpu.memory_space<vmem>>, vector<8x1xf32>
      %c28_52 = arith.constant 28 : index
      %c0_53 = arith.constant 0 : index
      %165 = vector.load %arg10[%c28_52, %c0_53] : memref<32x256xf32, #tpu.memory_space<vmem>>, vector<1x256xf32>
      %166 = vector.broadcast %164 : vector<8x1xf32> to vector<8x256xf32>
      %167 = vector.broadcast %165 : vector<1x256xf32> to vector<8x256xf32>
      %168 = arith.mulf %166, %167 : vector<8x256xf32>
      %169 = arith.addf %162, %168 : vector<8x256xf32>
      %170 = arith.mulf %156, %169 : vector<8x256xf32>
      %171 = arith.addf %152, %170 : vector<8x256xf32>
      %172 = arith.index_cast %13 : i32 to index
      %c1 = arith.constant 1 : index
      %173 = vector.load %arg5[%172, %c1] : memref<256x4xf32, #tpu.memory_space<vmem>>, vector<8x1xf32>
      %c1_54 = arith.constant 1 : index
      %c0_55 = arith.constant 0 : index
      %174 = vector.load %arg6[%c1_54, %c0_55] : memref<4x256xf32, #tpu.memory_space<vmem>>, vector<1x256xf32>
      %175 = vector.broadcast %173 : vector<8x1xf32> to vector<8x256xf32>
      %176 = vector.broadcast %174 : vector<1x256xf32> to vector<8x256xf32>
      %177 = arith.subf %175, %176 : vector<8x256xf32>
      %178 = arith.mulf %177, %177 : vector<8x256xf32>
      %c1_56 = arith.constant 1 : index
      %179 = memref.load %arg3[%c1_56] : memref<32xf32, #tpu.memory_space<smem>>
      %180 = vector.broadcast %179 : f32 to vector<8x256xf32>
      %181 = arith.mulf %180, %178 : vector<8x256xf32>
      %182 = math.exp %181 : vector<8x256xf32>
      %183 = arith.index_cast %13 : i32 to index
      %c1_57 = arith.constant 1 : index
      %184 = vector.load %arg7[%183, %c1_57] : memref<256x32xf32, #tpu.memory_space<vmem>>, vector<8x1xf32>
      %c1_58 = arith.constant 1 : index
      %c0_59 = arith.constant 0 : index
      %185 = vector.load %arg9[%c1_58, %c0_59] : memref<32x256xf32, #tpu.memory_space<vmem>>, vector<1x256xf32>
      %186 = vector.broadcast %184 : vector<8x1xf32> to vector<8x256xf32>
      %187 = vector.broadcast %185 : vector<1x256xf32> to vector<8x256xf32>
      %188 = arith.mulf %186, %187 : vector<8x256xf32>
      %189 = arith.index_cast %13 : i32 to index
      %c1_60 = arith.constant 1 : index
      %190 = vector.load %arg8[%189, %c1_60] : memref<256x32xf32, #tpu.memory_space<vmem>>, vector<8x1xf32>
      %c1_61 = arith.constant 1 : index
      %c0_62 = arith.constant 0 : index
      %191 = vector.load %arg10[%c1_61, %c0_62] : memref<32x256xf32, #tpu.memory_space<vmem>>, vector<1x256xf32>
      %192 = vector.broadcast %190 : vector<8x1xf32> to vector<8x256xf32>
      %193 = vector.broadcast %191 : vector<1x256xf32> to vector<8x256xf32>
      %194 = arith.mulf %192, %193 : vector<8x256xf32>
      %195 = arith.addf %188, %194 : vector<8x256xf32>
      %196 = arith.mulf %182, %195 : vector<8x256xf32>
      %c5 = arith.constant 5 : index
      %197 = memref.load %arg3[%c5] : memref<32xf32, #tpu.memory_space<smem>>
      %198 = vector.broadcast %197 : f32 to vector<8x256xf32>
      %199 = arith.mulf %198, %178 : vector<8x256xf32>
      %200 = math.exp %199 : vector<8x256xf32>
      %201 = arith.index_cast %13 : i32 to index
      %c5_63 = arith.constant 5 : index
      %202 = vector.load %arg7[%201, %c5_63] : memref<256x32xf32, #tpu.memory_space<vmem>>, vector<8x1xf32>
      %c5_64 = arith.constant 5 : index
      %c0_65 = arith.constant 0 : index
      %203 = vector.load %arg9[%c5_64, %c0_65] : memref<32x256xf32, #tpu.memory_space<vmem>>, vector<1x256xf32>
      %204 = vector.broadcast %202 : vector<8x1xf32> to vector<8x256xf32>
      %205 = vector.broadcast %203 : vector<1x256xf32> to vector<8x256xf32>
      %206 = arith.mulf %204, %205 : vector<8x256xf32>
      %207 = arith.index_cast %13 : i32 to index
      %c5_66 = arith.constant 5 : index
      %208 = vector.load %arg8[%207, %c5_66] : memref<256x32xf32, #tpu.memory_space<vmem>>, vector<8x1xf32>
      %c5_67 = arith.constant 5 : index
      %c0_68 = arith.constant 0 : index
      %209 = vector.load %arg10[%c5_67, %c0_68] : memref<32x256xf32, #tpu.memory_space<vmem>>, vector<1x256xf32>
      %210 = vector.broadcast %208 : vector<8x1xf32> to vector<8x256xf32>
      %211 = vector.broadcast %209 : vector<1x256xf32> to vector<8x256xf32>
      %212 = arith.mulf %210, %211 : vector<8x256xf32>
      %213 = arith.addf %206, %212 : vector<8x256xf32>
      %214 = arith.mulf %200, %213 : vector<8x256xf32>
      %215 = arith.addf %196, %214 : vector<8x256xf32>
      %c9 = arith.constant 9 : index
      %216 = memref.load %arg3[%c9] : memref<32xf32, #tpu.memory_space<smem>>
      %217 = vector.broadcast %216 : f32 to vector<8x256xf32>
      %218 = arith.mulf %217, %178 : vector<8x256xf32>
      %219 = math.exp %218 : vector<8x256xf32>
      %220 = arith.index_cast %13 : i32 to index
      %c9_69 = arith.constant 9 : index
      %221 = vector.load %arg7[%220, %c9_69] : memref<256x32xf32, #tpu.memory_space<vmem>>, vector<8x1xf32>
      %c9_70 = arith.constant 9 : index
      %c0_71 = arith.constant 0 : index
      %222 = vector.load %arg9[%c9_70, %c0_71] : memref<32x256xf32, #tpu.memory_space<vmem>>, vector<1x256xf32>
      %223 = vector.broadcast %221 : vector<8x1xf32> to vector<8x256xf32>
      %224 = vector.broadcast %222 : vector<1x256xf32> to vector<8x256xf32>
      %225 = arith.mulf %223, %224 : vector<8x256xf32>
      %226 = arith.index_cast %13 : i32 to index
      %c9_72 = arith.constant 9 : index
      %227 = vector.load %arg8[%226, %c9_72] : memref<256x32xf32, #tpu.memory_space<vmem>>, vector<8x1xf32>
      %c9_73 = arith.constant 9 : index
      %c0_74 = arith.constant 0 : index
      %228 = vector.load %arg10[%c9_73, %c0_74] : memref<32x256xf32, #tpu.memory_space<vmem>>, vector<1x256xf32>
      %229 = vector.broadcast %227 : vector<8x1xf32> to vector<8x256xf32>
      %230 = vector.broadcast %228 : vector<1x256xf32> to vector<8x256xf32>
      %231 = arith.mulf %229, %230 : vector<8x256xf32>
      %232 = arith.addf %225, %231 : vector<8x256xf32>
      %233 = arith.mulf %219, %232 : vector<8x256xf32>
      %234 = arith.addf %215, %233 : vector<8x256xf32>
      %c13 = arith.constant 13 : index
      %235 = memref.load %arg3[%c13] : memref<32xf32, #tpu.memory_space<smem>>
      %236 = vector.broadcast %235 : f32 to vector<8x256xf32>
      %237 = arith.mulf %236, %178 : vector<8x256xf32>
      %238 = math.exp %237 : vector<8x256xf32>
      %239 = arith.index_cast %13 : i32 to index
      %c13_75 = arith.constant 13 : index
      %240 = vector.load %arg7[%239, %c13_75] : memref<256x32xf32, #tpu.memory_space<vmem>>, vector<8x1xf32>
      %c13_76 = arith.constant 13 : index
      %c0_77 = arith.constant 0 : index
      %241 = vector.load %arg9[%c13_76, %c0_77] : memref<32x256xf32, #tpu.memory_space<vmem>>, vector<1x256xf32>
      %242 = vector.broadcast %240 : vector<8x1xf32> to vector<8x256xf32>
      %243 = vector.broadcast %241 : vector<1x256xf32> to vector<8x256xf32>
      %244 = arith.mulf %242, %243 : vector<8x256xf32>
      %245 = arith.index_cast %13 : i32 to index
      %c13_78 = arith.constant 13 : index
      %246 = vector.load %arg8[%245, %c13_78] : memref<256x32xf32, #tpu.memory_space<vmem>>, vector<8x1xf32>
      %c13_79 = arith.constant 13 : index
      %c0_80 = arith.constant 0 : index
      %247 = vector.load %arg10[%c13_79, %c0_80] : memref<32x256xf32, #tpu.memory_space<vmem>>, vector<1x256xf32>
      %248 = vector.broadcast %246 : vector<8x1xf32> to vector<8x256xf32>
      %249 = vector.broadcast %247 : vector<1x256xf32> to vector<8x256xf32>
      %250 = arith.mulf %248, %249 : vector<8x256xf32>
      %251 = arith.addf %244, %250 : vector<8x256xf32>
      %252 = arith.mulf %238, %251 : vector<8x256xf32>
      %253 = arith.addf %234, %252 : vector<8x256xf32>
      %c17 = arith.constant 17 : index
      %254 = memref.load %arg3[%c17] : memref<32xf32, #tpu.memory_space<smem>>
      %255 = vector.broadcast %254 : f32 to vector<8x256xf32>
      %256 = arith.mulf %255, %178 : vector<8x256xf32>
      %257 = math.exp %256 : vector<8x256xf32>
      %258 = arith.index_cast %13 : i32 to index
      %c17_81 = arith.constant 17 : index
      %259 = vector.load %arg7[%258, %c17_81] : memref<256x32xf32, #tpu.memory_space<vmem>>, vector<8x1xf32>
      %c17_82 = arith.constant 17 : index
      %c0_83 = arith.constant 0 : index
      %260 = vector.load %arg9[%c17_82, %c0_83] : memref<32x256xf32, #tpu.memory_space<vmem>>, vector<1x256xf32>
      %261 = vector.broadcast %259 : vector<8x1xf32> to vector<8x256xf32>
      %262 = vector.broadcast %260 : vector<1x256xf32> to vector<8x256xf32>
      %263 = arith.mulf %261, %262 : vector<8x256xf32>
      %264 = arith.index_cast %13 : i32 to index
      %c17_84 = arith.constant 17 : index
      %265 = vector.load %arg8[%264, %c17_84] : memref<256x32xf32, #tpu.memory_space<vmem>>, vector<8x1xf32>
      %c17_85 = arith.constant 17 : index
      %c0_86 = arith.constant 0 : index
      %266 = vector.load %arg10[%c17_85, %c0_86] : memref<32x256xf32, #tpu.memory_space<vmem>>, vector<1x256xf32>
      %267 = vector.broadcast %265 : vector<8x1xf32> to vector<8x256xf32>
      %268 = vector.broadcast %266 : vector<1x256xf32> to vector<8x256xf32>
      %269 = arith.mulf %267, %268 : vector<8x256xf32>
      %270 = arith.addf %263, %269 : vector<8x256xf32>
      %271 = arith.mulf %257, %270 : vector<8x256xf32>
      %272 = arith.addf %253, %271 : vector<8x256xf32>
      %c21 = arith.constant 21 : index
      %273 = memref.load %arg3[%c21] : memref<32xf32, #tpu.memory_space<smem>>
      %274 = vector.broadcast %273 : f32 to vector<8x256xf32>
      %275 = arith.mulf %274, %178 : vector<8x256xf32>
      %276 = math.exp %275 : vector<8x256xf32>
      %277 = arith.index_cast %13 : i32 to index
      %c21_87 = arith.constant 21 : index
      %278 = vector.load %arg7[%277, %c21_87] : memref<256x32xf32, #tpu.memory_space<vmem>>, vector<8x1xf32>
      %c21_88 = arith.constant 21 : index
      %c0_89 = arith.constant 0 : index
      %279 = vector.load %arg9[%c21_88, %c0_89] : memref<32x256xf32, #tpu.memory_space<vmem>>, vector<1x256xf32>
      %280 = vector.broadcast %278 : vector<8x1xf32> to vector<8x256xf32>
      %281 = vector.broadcast %279 : vector<1x256xf32> to vector<8x256xf32>
      %282 = arith.mulf %280, %281 : vector<8x256xf32>
      %283 = arith.index_cast %13 : i32 to index
      %c21_90 = arith.constant 21 : index
      %284 = vector.load %arg8[%283, %c21_90] : memref<256x32xf32, #tpu.memory_space<vmem>>, vector<8x1xf32>
      %c21_91 = arith.constant 21 : index
      %c0_92 = arith.constant 0 : index
      %285 = vector.load %arg10[%c21_91, %c0_92] : memref<32x256xf32, #tpu.memory_space<vmem>>, vector<1x256xf32>
      %286 = vector.broadcast %284 : vector<8x1xf32> to vector<8x256xf32>
      %287 = vector.broadcast %285 : vector<1x256xf32> to vector<8x256xf32>
      %288 = arith.mulf %286, %287 : vector<8x256xf32>
      %289 = arith.addf %282, %288 : vector<8x256xf32>
      %290 = arith.mulf %276, %289 : vector<8x256xf32>
      %291 = arith.addf %272, %290 : vector<8x256xf32>
      %c25 = arith.constant 25 : index
      %292 = memref.load %arg3[%c25] : memref<32xf32, #tpu.memory_space<smem>>
      %293 = vector.broadcast %292 : f32 to vector<8x256xf32>
      %294 = arith.mulf %293, %178 : vector<8x256xf32>
      %295 = math.exp %294 : vector<8x256xf32>
      %296 = arith.index_cast %13 : i32 to index
      %c25_93 = arith.constant 25 : index
      %297 = vector.load %arg7[%296, %c25_93] : memref<256x32xf32, #tpu.memory_space<vmem>>, vector<8x1xf32>
      %c25_94 = arith.constant 25 : index
      %c0_95 = arith.constant 0 : index
      %298 = vector.load %arg9[%c25_94, %c0_95] : memref<32x256xf32, #tpu.memory_space<vmem>>, vector<1x256xf32>
      %299 = vector.broadcast %297 : vector<8x1xf32> to vector<8x256xf32>
      %300 = vector.broadcast %298 : vector<1x256xf32> to vector<8x256xf32>
      %301 = arith.mulf %299, %300 : vector<8x256xf32>
      %302 = arith.index_cast %13 : i32 to index
      %c25_96 = arith.constant 25 : index
      %303 = vector.load %arg8[%302, %c25_96] : memref<256x32xf32, #tpu.memory_space<vmem>>, vector<8x1xf32>
      %c25_97 = arith.constant 25 : index
      %c0_98 = arith.constant 0 : index
      %304 = vector.load %arg10[%c25_97, %c0_98] : memref<32x256xf32, #tpu.memory_space<vmem>>, vector<1x256xf32>
      %305 = vector.broadcast %303 : vector<8x1xf32> to vector<8x256xf32>
      %306 = vector.broadcast %304 : vector<1x256xf32> to vector<8x256xf32>
      %307 = arith.mulf %305, %306 : vector<8x256xf32>
      %308 = arith.addf %301, %307 : vector<8x256xf32>
      %309 = arith.mulf %295, %308 : vector<8x256xf32>
      %310 = arith.addf %291, %309 : vector<8x256xf32>
      %c29 = arith.constant 29 : index
      %311 = memref.load %arg3[%c29] : memref<32xf32, #tpu.memory_space<smem>>
      %312 = vector.broadcast %311 : f32 to vector<8x256xf32>
      %313 = arith.mulf %312, %178 : vector<8x256xf32>
      %314 = math.exp %313 : vector<8x256xf32>
      %315 = arith.index_cast %13 : i32 to index
      %c29_99 = arith.constant 29 : index
      %316 = vector.load %arg7[%315, %c29_99] : memref<256x32xf32, #tpu.memory_space<vmem>>, vector<8x1xf32>
      %c29_100 = arith.constant 29 : index
      %c0_101 = arith.constant 0 : index
      %317 = vector.load %arg9[%c29_100, %c0_101] : memref<32x256xf32, #tpu.memory_space<vmem>>, vector<1x256xf32>
      %318 = vector.broadcast %316 : vector<8x1xf32> to vector<8x256xf32>
      %319 = vector.broadcast %317 : vector<1x256xf32> to vector<8x256xf32>
      %320 = arith.mulf %318, %319 : vector<8x256xf32>
      %321 = arith.index_cast %13 : i32 to index
      %c29_102 = arith.constant 29 : index
      %322 = vector.load %arg8[%321, %c29_102] : memref<256x32xf32, #tpu.memory_space<vmem>>, vector<8x1xf32>
      %c29_103 = arith.constant 29 : index
      %c0_104 = arith.constant 0 : index
      %323 = vector.load %arg10[%c29_103, %c0_104] : memref<32x256xf32, #tpu.memory_space<vmem>>, vector<1x256xf32>
      %324 = vector.broadcast %322 : vector<8x1xf32> to vector<8x256xf32>
      %325 = vector.broadcast %323 : vector<1x256xf32> to vector<8x256xf32>
      %326 = arith.mulf %324, %325 : vector<8x256xf32>
      %327 = arith.addf %320, %326 : vector<8x256xf32>
      %328 = arith.mulf %314, %327 : vector<8x256xf32>
      %329 = arith.addf %310, %328 : vector<8x256xf32>
      %330 = arith.mulf %171, %329 : vector<8x256xf32>
      %331 = arith.index_cast %13 : i32 to index
      %c2 = arith.constant 2 : index
      %332 = vector.load %arg5[%331, %c2] : memref<256x4xf32, #tpu.memory_space<vmem>>, vector<8x1xf32>
      %c2_105 = arith.constant 2 : index
      %c0_106 = arith.constant 0 : index
      %333 = vector.load %arg6[%c2_105, %c0_106] : memref<4x256xf32, #tpu.memory_space<vmem>>, vector<1x256xf32>
      %334 = vector.broadcast %332 : vector<8x1xf32> to vector<8x256xf32>
      %335 = vector.broadcast %333 : vector<1x256xf32> to vector<8x256xf32>
      %336 = arith.subf %334, %335 : vector<8x256xf32>
      %337 = arith.mulf %336, %336 : vector<8x256xf32>
      %c2_107 = arith.constant 2 : index
      %338 = memref.load %arg3[%c2_107] : memref<32xf32, #tpu.memory_space<smem>>
      %339 = vector.broadcast %338 : f32 to vector<8x256xf32>
      %340 = arith.mulf %339, %337 : vector<8x256xf32>
      %341 = math.exp %340 : vector<8x256xf32>
      %342 = arith.index_cast %13 : i32 to index
      %c2_108 = arith.constant 2 : index
      %343 = vector.load %arg7[%342, %c2_108] : memref<256x32xf32, #tpu.memory_space<vmem>>, vector<8x1xf32>
      %c2_109 = arith.constant 2 : index
      %c0_110 = arith.constant 0 : index
      %344 = vector.load %arg9[%c2_109, %c0_110] : memref<32x256xf32, #tpu.memory_space<vmem>>, vector<1x256xf32>
      %345 = vector.broadcast %343 : vector<8x1xf32> to vector<8x256xf32>
      %346 = vector.broadcast %344 : vector<1x256xf32> to vector<8x256xf32>
      %347 = arith.mulf %345, %346 : vector<8x256xf32>
      %348 = arith.index_cast %13 : i32 to index
      %c2_111 = arith.constant 2 : index
      %349 = vector.load %arg8[%348, %c2_111] : memref<256x32xf32, #tpu.memory_space<vmem>>, vector<8x1xf32>
      %c2_112 = arith.constant 2 : index
      %c0_113 = arith.constant 0 : index
      %350 = vector.load %arg10[%c2_112, %c0_113] : memref<32x256xf32, #tpu.memory_space<vmem>>, vector<1x256xf32>
      %351 = vector.broadcast %349 : vector<8x1xf32> to vector<8x256xf32>
      %352 = vector.broadcast %350 : vector<1x256xf32> to vector<8x256xf32>
      %353 = arith.mulf %351, %352 : vector<8x256xf32>
      %354 = arith.addf %347, %353 : vector<8x256xf32>
      %355 = arith.mulf %341, %354 : vector<8x256xf32>
      %c6 = arith.constant 6 : index
      %356 = memref.load %arg3[%c6] : memref<32xf32, #tpu.memory_space<smem>>
      %357 = vector.broadcast %356 : f32 to vector<8x256xf32>
      %358 = arith.mulf %357, %337 : vector<8x256xf32>
      %359 = math.exp %358 : vector<8x256xf32>
      %360 = arith.index_cast %13 : i32 to index
      %c6_114 = arith.constant 6 : index
      %361 = vector.load %arg7[%360, %c6_114] : memref<256x32xf32, #tpu.memory_space<vmem>>, vector<8x1xf32>
      %c6_115 = arith.constant 6 : index
      %c0_116 = arith.constant 0 : index
      %362 = vector.load %arg9[%c6_115, %c0_116] : memref<32x256xf32, #tpu.memory_space<vmem>>, vector<1x256xf32>
      %363 = vector.broadcast %361 : vector<8x1xf32> to vector<8x256xf32>
      %364 = vector.broadcast %362 : vector<1x256xf32> to vector<8x256xf32>
      %365 = arith.mulf %363, %364 : vector<8x256xf32>
      %366 = arith.index_cast %13 : i32 to index
      %c6_117 = arith.constant 6 : index
      %367 = vector.load %arg8[%366, %c6_117] : memref<256x32xf32, #tpu.memory_space<vmem>>, vector<8x1xf32>
      %c6_118 = arith.constant 6 : index
      %c0_119 = arith.constant 0 : index
      %368 = vector.load %arg10[%c6_118, %c0_119] : memref<32x256xf32, #tpu.memory_space<vmem>>, vector<1x256xf32>
      %369 = vector.broadcast %367 : vector<8x1xf32> to vector<8x256xf32>
      %370 = vector.broadcast %368 : vector<1x256xf32> to vector<8x256xf32>
      %371 = arith.mulf %369, %370 : vector<8x256xf32>
      %372 = arith.addf %365, %371 : vector<8x256xf32>
      %373 = arith.mulf %359, %372 : vector<8x256xf32>
      %374 = arith.addf %355, %373 : vector<8x256xf32>
      %c10 = arith.constant 10 : index
      %375 = memref.load %arg3[%c10] : memref<32xf32, #tpu.memory_space<smem>>
      %376 = vector.broadcast %375 : f32 to vector<8x256xf32>
      %377 = arith.mulf %376, %337 : vector<8x256xf32>
      %378 = math.exp %377 : vector<8x256xf32>
      %379 = arith.index_cast %13 : i32 to index
      %c10_120 = arith.constant 10 : index
      %380 = vector.load %arg7[%379, %c10_120] : memref<256x32xf32, #tpu.memory_space<vmem>>, vector<8x1xf32>
      %c10_121 = arith.constant 10 : index
      %c0_122 = arith.constant 0 : index
      %381 = vector.load %arg9[%c10_121, %c0_122] : memref<32x256xf32, #tpu.memory_space<vmem>>, vector<1x256xf32>
      %382 = vector.broadcast %380 : vector<8x1xf32> to vector<8x256xf32>
      %383 = vector.broadcast %381 : vector<1x256xf32> to vector<8x256xf32>
      %384 = arith.mulf %382, %383 : vector<8x256xf32>
      %385 = arith.index_cast %13 : i32 to index
      %c10_123 = arith.constant 10 : index
      %386 = vector.load %arg8[%385, %c10_123] : memref<256x32xf32, #tpu.memory_space<vmem>>, vector<8x1xf32>
      %c10_124 = arith.constant 10 : index
      %c0_125 = arith.constant 0 : index
      %387 = vector.load %arg10[%c10_124, %c0_125] : memref<32x256xf32, #tpu.memory_space<vmem>>, vector<1x256xf32>
      %388 = vector.broadcast %386 : vector<8x1xf32> to vector<8x256xf32>
      %389 = vector.broadcast %387 : vector<1x256xf32> to vector<8x256xf32>
      %390 = arith.mulf %388, %389 : vector<8x256xf32>
      %391 = arith.addf %384, %390 : vector<8x256xf32>
      %392 = arith.mulf %378, %391 : vector<8x256xf32>
      %393 = arith.addf %374, %392 : vector<8x256xf32>
      %c14 = arith.constant 14 : index
      %394 = memref.load %arg3[%c14] : memref<32xf32, #tpu.memory_space<smem>>
      %395 = vector.broadcast %394 : f32 to vector<8x256xf32>
      %396 = arith.mulf %395, %337 : vector<8x256xf32>
      %397 = math.exp %396 : vector<8x256xf32>
      %398 = arith.index_cast %13 : i32 to index
      %c14_126 = arith.constant 14 : index
      %399 = vector.load %arg7[%398, %c14_126] : memref<256x32xf32, #tpu.memory_space<vmem>>, vector<8x1xf32>
      %c14_127 = arith.constant 14 : index
      %c0_128 = arith.constant 0 : index
      %400 = vector.load %arg9[%c14_127, %c0_128] : memref<32x256xf32, #tpu.memory_space<vmem>>, vector<1x256xf32>
      %401 = vector.broadcast %399 : vector<8x1xf32> to vector<8x256xf32>
      %402 = vector.broadcast %400 : vector<1x256xf32> to vector<8x256xf32>
      %403 = arith.mulf %401, %402 : vector<8x256xf32>
      %404 = arith.index_cast %13 : i32 to index
      %c14_129 = arith.constant 14 : index
      %405 = vector.load %arg8[%404, %c14_129] : memref<256x32xf32, #tpu.memory_space<vmem>>, vector<8x1xf32>
      %c14_130 = arith.constant 14 : index
      %c0_131 = arith.constant 0 : index
      %406 = vector.load %arg10[%c14_130, %c0_131] : memref<32x256xf32, #tpu.memory_space<vmem>>, vector<1x256xf32>
      %407 = vector.broadcast %405 : vector<8x1xf32> to vector<8x256xf32>
      %408 = vector.broadcast %406 : vector<1x256xf32> to vector<8x256xf32>
      %409 = arith.mulf %407, %408 : vector<8x256xf32>
      %410 = arith.addf %403, %409 : vector<8x256xf32>
      %411 = arith.mulf %397, %410 : vector<8x256xf32>
      %412 = arith.addf %393, %411 : vector<8x256xf32>
      %c18 = arith.constant 18 : index
      %413 = memref.load %arg3[%c18] : memref<32xf32, #tpu.memory_space<smem>>
      %414 = vector.broadcast %413 : f32 to vector<8x256xf32>
      %415 = arith.mulf %414, %337 : vector<8x256xf32>
      %416 = math.exp %415 : vector<8x256xf32>
      %417 = arith.index_cast %13 : i32 to index
      %c18_132 = arith.constant 18 : index
      %418 = vector.load %arg7[%417, %c18_132] : memref<256x32xf32, #tpu.memory_space<vmem>>, vector<8x1xf32>
      %c18_133 = arith.constant 18 : index
      %c0_134 = arith.constant 0 : index
      %419 = vector.load %arg9[%c18_133, %c0_134] : memref<32x256xf32, #tpu.memory_space<vmem>>, vector<1x256xf32>
      %420 = vector.broadcast %418 : vector<8x1xf32> to vector<8x256xf32>
      %421 = vector.broadcast %419 : vector<1x256xf32> to vector<8x256xf32>
      %422 = arith.mulf %420, %421 : vector<8x256xf32>
      %423 = arith.index_cast %13 : i32 to index
      %c18_135 = arith.constant 18 : index
      %424 = vector.load %arg8[%423, %c18_135] : memref<256x32xf32, #tpu.memory_space<vmem>>, vector<8x1xf32>
      %c18_136 = arith.constant 18 : index
      %c0_137 = arith.constant 0 : index
      %425 = vector.load %arg10[%c18_136, %c0_137] : memref<32x256xf32, #tpu.memory_space<vmem>>, vector<1x256xf32>
      %426 = vector.broadcast %424 : vector<8x1xf32> to vector<8x256xf32>
      %427 = vector.broadcast %425 : vector<1x256xf32> to vector<8x256xf32>
      %428 = arith.mulf %426, %427 : vector<8x256xf32>
      %429 = arith.addf %422, %428 : vector<8x256xf32>
      %430 = arith.mulf %416, %429 : vector<8x256xf32>
      %431 = arith.addf %412, %430 : vector<8x256xf32>
      %c22 = arith.constant 22 : index
      %432 = memref.load %arg3[%c22] : memref<32xf32, #tpu.memory_space<smem>>
      %433 = vector.broadcast %432 : f32 to vector<8x256xf32>
      %434 = arith.mulf %433, %337 : vector<8x256xf32>
      %435 = math.exp %434 : vector<8x256xf32>
      %436 = arith.index_cast %13 : i32 to index
      %c22_138 = arith.constant 22 : index
      %437 = vector.load %arg7[%436, %c22_138] : memref<256x32xf32, #tpu.memory_space<vmem>>, vector<8x1xf32>
      %c22_139 = arith.constant 22 : index
      %c0_140 = arith.constant 0 : index
      %438 = vector.load %arg9[%c22_139, %c0_140] : memref<32x256xf32, #tpu.memory_space<vmem>>, vector<1x256xf32>
      %439 = vector.broadcast %437 : vector<8x1xf32> to vector<8x256xf32>
      %440 = vector.broadcast %438 : vector<1x256xf32> to vector<8x256xf32>
      %441 = arith.mulf %439, %440 : vector<8x256xf32>
      %442 = arith.index_cast %13 : i32 to index
      %c22_141 = arith.constant 22 : index
      %443 = vector.load %arg8[%442, %c22_141] : memref<256x32xf32, #tpu.memory_space<vmem>>, vector<8x1xf32>
      %c22_142 = arith.constant 22 : index
      %c0_143 = arith.constant 0 : index
      %444 = vector.load %arg10[%c22_142, %c0_143] : memref<32x256xf32, #tpu.memory_space<vmem>>, vector<1x256xf32>
      %445 = vector.broadcast %443 : vector<8x1xf32> to vector<8x256xf32>
      %446 = vector.broadcast %444 : vector<1x256xf32> to vector<8x256xf32>
      %447 = arith.mulf %445, %446 : vector<8x256xf32>
      %448 = arith.addf %441, %447 : vector<8x256xf32>
      %449 = arith.mulf %435, %448 : vector<8x256xf32>
      %450 = arith.addf %431, %449 : vector<8x256xf32>
      %c26 = arith.constant 26 : index
      %451 = memref.load %arg3[%c26] : memref<32xf32, #tpu.memory_space<smem>>
      %452 = vector.broadcast %451 : f32 to vector<8x256xf32>
      %453 = arith.mulf %452, %337 : vector<8x256xf32>
      %454 = math.exp %453 : vector<8x256xf32>
      %455 = arith.index_cast %13 : i32 to index
      %c26_144 = arith.constant 26 : index
      %456 = vector.load %arg7[%455, %c26_144] : memref<256x32xf32, #tpu.memory_space<vmem>>, vector<8x1xf32>
      %c26_145 = arith.constant 26 : index
      %c0_146 = arith.constant 0 : index
      %457 = vector.load %arg9[%c26_145, %c0_146] : memref<32x256xf32, #tpu.memory_space<vmem>>, vector<1x256xf32>
      %458 = vector.broadcast %456 : vector<8x1xf32> to vector<8x256xf32>
      %459 = vector.broadcast %457 : vector<1x256xf32> to vector<8x256xf32>
      %460 = arith.mulf %458, %459 : vector<8x256xf32>
      %461 = arith.index_cast %13 : i32 to index
      %c26_147 = arith.constant 26 : index
      %462 = vector.load %arg8[%461, %c26_147] : memref<256x32xf32, #tpu.memory_space<vmem>>, vector<8x1xf32>
      %c26_148 = arith.constant 26 : index
      %c0_149 = arith.constant 0 : index
      %463 = vector.load %arg10[%c26_148, %c0_149] : memref<32x256xf32, #tpu.memory_space<vmem>>, vector<1x256xf32>
      %464 = vector.broadcast %462 : vector<8x1xf32> to vector<8x256xf32>
      %465 = vector.broadcast %463 : vector<1x256xf32> to vector<8x256xf32>
      %466 = arith.mulf %464, %465 : vector<8x256xf32>
      %467 = arith.addf %460, %466 : vector<8x256xf32>
      %468 = arith.mulf %454, %467 : vector<8x256xf32>
      %469 = arith.addf %450, %468 : vector<8x256xf32>
      %c30 = arith.constant 30 : index
      %470 = memref.load %arg3[%c30] : memref<32xf32, #tpu.memory_space<smem>>
      %471 = vector.broadcast %470 : f32 to vector<8x256xf32>
      %472 = arith.mulf %471, %337 : vector<8x256xf32>
      %473 = math.exp %472 : vector<8x256xf32>
      %474 = arith.index_cast %13 : i32 to index
      %c30_150 = arith.constant 30 : index
      %475 = vector.load %arg7[%474, %c30_150] : memref<256x32xf32, #tpu.memory_space<vmem>>, vector<8x1xf32>
      %c30_151 = arith.constant 30 : index
      %c0_152 = arith.constant 0 : index
      %476 = vector.load %arg9[%c30_151, %c0_152] : memref<32x256xf32, #tpu.memory_space<vmem>>, vector<1x256xf32>
      %477 = vector.broadcast %475 : vector<8x1xf32> to vector<8x256xf32>
      %478 = vector.broadcast %476 : vector<1x256xf32> to vector<8x256xf32>
      %479 = arith.mulf %477, %478 : vector<8x256xf32>
      %480 = arith.index_cast %13 : i32 to index
      %c30_153 = arith.constant 30 : index
      %481 = vector.load %arg8[%480, %c30_153] : memref<256x32xf32, #tpu.memory_space<vmem>>, vector<8x1xf32>
      %c30_154 = arith.constant 30 : index
      %c0_155 = arith.constant 0 : index
      %482 = vector.load %arg10[%c30_154, %c0_155] : memref<32x256xf32, #tpu.memory_space<vmem>>, vector<1x256xf32>
      %483 = vector.broadcast %481 : vector<8x1xf32> to vector<8x256xf32>
      %484 = vector.broadcast %482 : vector<1x256xf32> to vector<8x256xf32>
      %485 = arith.mulf %483, %484 : vector<8x256xf32>
      %486 = arith.addf %479, %485 : vector<8x256xf32>
      %487 = arith.mulf %473, %486 : vector<8x256xf32>
      %488 = arith.addf %469, %487 : vector<8x256xf32>
      %489 = arith.mulf %330, %488 : vector<8x256xf32>
      %490 = arith.index_cast %13 : i32 to index
      %c3 = arith.constant 3 : index
      %491 = vector.load %arg5[%490, %c3] : memref<256x4xf32, #tpu.memory_space<vmem>>, vector<8x1xf32>
      %c3_156 = arith.constant 3 : index
      %c0_157 = arith.constant 0 : index
      %492 = vector.load %arg6[%c3_156, %c0_157] : memref<4x256xf32, #tpu.memory_space<vmem>>, vector<1x256xf32>
      %493 = vector.broadcast %491 : vector<8x1xf32> to vector<8x256xf32>
      %494 = vector.broadcast %492 : vector<1x256xf32> to vector<8x256xf32>
      %495 = arith.subf %493, %494 : vector<8x256xf32>
      %496 = arith.mulf %495, %495 : vector<8x256xf32>
      %c3_158 = arith.constant 3 : index
      %497 = memref.load %arg3[%c3_158] : memref<32xf32, #tpu.memory_space<smem>>
      %498 = vector.broadcast %497 : f32 to vector<8x256xf32>
      %499 = arith.mulf %498, %496 : vector<8x256xf32>
      %500 = math.exp %499 : vector<8x256xf32>
      %501 = arith.index_cast %13 : i32 to index
      %c3_159 = arith.constant 3 : index
      %502 = vector.load %arg7[%501, %c3_159] : memref<256x32xf32, #tpu.memory_space<vmem>>, vector<8x1xf32>
      %c3_160 = arith.constant 3 : index
      %c0_161 = arith.constant 0 : index
      %503 = vector.load %arg9[%c3_160, %c0_161] : memref<32x256xf32, #tpu.memory_space<vmem>>, vector<1x256xf32>
      %504 = vector.broadcast %502 : vector<8x1xf32> to vector<8x256xf32>
      %505 = vector.broadcast %503 : vector<1x256xf32> to vector<8x256xf32>
      %506 = arith.mulf %504, %505 : vector<8x256xf32>
      %507 = arith.index_cast %13 : i32 to index
      %c3_162 = arith.constant 3 : index
      %508 = vector.load %arg8[%507, %c3_162] : memref<256x32xf32, #tpu.memory_space<vmem>>, vector<8x1xf32>
      %c3_163 = arith.constant 3 : index
      %c0_164 = arith.constant 0 : index
      %509 = vector.load %arg10[%c3_163, %c0_164] : memref<32x256xf32, #tpu.memory_space<vmem>>, vector<1x256xf32>
      %510 = vector.broadcast %508 : vector<8x1xf32> to vector<8x256xf32>
      %511 = vector.broadcast %509 : vector<1x256xf32> to vector<8x256xf32>
      %512 = arith.mulf %510, %511 : vector<8x256xf32>
      %513 = arith.addf %506, %512 : vector<8x256xf32>
      %514 = arith.mulf %500, %513 : vector<8x256xf32>
      %c7 = arith.constant 7 : index
      %515 = memref.load %arg3[%c7] : memref<32xf32, #tpu.memory_space<smem>>
      %516 = vector.broadcast %515 : f32 to vector<8x256xf32>
      %517 = arith.mulf %516, %496 : vector<8x256xf32>
      %518 = math.exp %517 : vector<8x256xf32>
      %519 = arith.index_cast %13 : i32 to index
      %c7_165 = arith.constant 7 : index
      %520 = vector.load %arg7[%519, %c7_165] : memref<256x32xf32, #tpu.memory_space<vmem>>, vector<8x1xf32>
      %c7_166 = arith.constant 7 : index
      %c0_167 = arith.constant 0 : index
      %521 = vector.load %arg9[%c7_166, %c0_167] : memref<32x256xf32, #tpu.memory_space<vmem>>, vector<1x256xf32>
      %522 = vector.broadcast %520 : vector<8x1xf32> to vector<8x256xf32>
      %523 = vector.broadcast %521 : vector<1x256xf32> to vector<8x256xf32>
      %524 = arith.mulf %522, %523 : vector<8x256xf32>
      %525 = arith.index_cast %13 : i32 to index
      %c7_168 = arith.constant 7 : index
      %526 = vector.load %arg8[%525, %c7_168] : memref<256x32xf32, #tpu.memory_space<vmem>>, vector<8x1xf32>
      %c7_169 = arith.constant 7 : index
      %c0_170 = arith.constant 0 : index
      %527 = vector.load %arg10[%c7_169, %c0_170] : memref<32x256xf32, #tpu.memory_space<vmem>>, vector<1x256xf32>
      %528 = vector.broadcast %526 : vector<8x1xf32> to vector<8x256xf32>
      %529 = vector.broadcast %527 : vector<1x256xf32> to vector<8x256xf32>
      %530 = arith.mulf %528, %529 : vector<8x256xf32>
      %531 = arith.addf %524, %530 : vector<8x256xf32>
      %532 = arith.mulf %518, %531 : vector<8x256xf32>
      %533 = arith.addf %514, %532 : vector<8x256xf32>
      %c11 = arith.constant 11 : index
      %534 = memref.load %arg3[%c11] : memref<32xf32, #tpu.memory_space<smem>>
      %535 = vector.broadcast %534 : f32 to vector<8x256xf32>
      %536 = arith.mulf %535, %496 : vector<8x256xf32>
      %537 = math.exp %536 : vector<8x256xf32>
      %538 = arith.index_cast %13 : i32 to index
      %c11_171 = arith.constant 11 : index
      %539 = vector.load %arg7[%538, %c11_171] : memref<256x32xf32, #tpu.memory_space<vmem>>, vector<8x1xf32>
      %c11_172 = arith.constant 11 : index
      %c0_173 = arith.constant 0 : index
      %540 = vector.load %arg9[%c11_172, %c0_173] : memref<32x256xf32, #tpu.memory_space<vmem>>, vector<1x256xf32>
      %541 = vector.broadcast %539 : vector<8x1xf32> to vector<8x256xf32>
      %542 = vector.broadcast %540 : vector<1x256xf32> to vector<8x256xf32>
      %543 = arith.mulf %541, %542 : vector<8x256xf32>
      %544 = arith.index_cast %13 : i32 to index
      %c11_174 = arith.constant 11 : index
      %545 = vector.load %arg8[%544, %c11_174] : memref<256x32xf32, #tpu.memory_space<vmem>>, vector<8x1xf32>
      %c11_175 = arith.constant 11 : index
      %c0_176 = arith.constant 0 : index
      %546 = vector.load %arg10[%c11_175, %c0_176] : memref<32x256xf32, #tpu.memory_space<vmem>>, vector<1x256xf32>
      %547 = vector.broadcast %545 : vector<8x1xf32> to vector<8x256xf32>
      %548 = vector.broadcast %546 : vector<1x256xf32> to vector<8x256xf32>
      %549 = arith.mulf %547, %548 : vector<8x256xf32>
      %550 = arith.addf %543, %549 : vector<8x256xf32>
      %551 = arith.mulf %537, %550 : vector<8x256xf32>
      %552 = arith.addf %533, %551 : vector<8x256xf32>
      %c15 = arith.constant 15 : index
      %553 = memref.load %arg3[%c15] : memref<32xf32, #tpu.memory_space<smem>>
      %554 = vector.broadcast %553 : f32 to vector<8x256xf32>
      %555 = arith.mulf %554, %496 : vector<8x256xf32>
      %556 = math.exp %555 : vector<8x256xf32>
      %557 = arith.index_cast %13 : i32 to index
      %c15_177 = arith.constant 15 : index
      %558 = vector.load %arg7[%557, %c15_177] : memref<256x32xf32, #tpu.memory_space<vmem>>, vector<8x1xf32>
      %c15_178 = arith.constant 15 : index
      %c0_179 = arith.constant 0 : index
      %559 = vector.load %arg9[%c15_178, %c0_179] : memref<32x256xf32, #tpu.memory_space<vmem>>, vector<1x256xf32>
      %560 = vector.broadcast %558 : vector<8x1xf32> to vector<8x256xf32>
      %561 = vector.broadcast %559 : vector<1x256xf32> to vector<8x256xf32>
      %562 = arith.mulf %560, %561 : vector<8x256xf32>
      %563 = arith.index_cast %13 : i32 to index
      %c15_180 = arith.constant 15 : index
      %564 = vector.load %arg8[%563, %c15_180] : memref<256x32xf32, #tpu.memory_space<vmem>>, vector<8x1xf32>
      %c15_181 = arith.constant 15 : index
      %c0_182 = arith.constant 0 : index
      %565 = vector.load %arg10[%c15_181, %c0_182] : memref<32x256xf32, #tpu.memory_space<vmem>>, vector<1x256xf32>
      %566 = vector.broadcast %564 : vector<8x1xf32> to vector<8x256xf32>
      %567 = vector.broadcast %565 : vector<1x256xf32> to vector<8x256xf32>
      %568 = arith.mulf %566, %567 : vector<8x256xf32>
      %569 = arith.addf %562, %568 : vector<8x256xf32>
      %570 = arith.mulf %556, %569 : vector<8x256xf32>
      %571 = arith.addf %552, %570 : vector<8x256xf32>
      %c19 = arith.constant 19 : index
      %572 = memref.load %arg3[%c19] : memref<32xf32, #tpu.memory_space<smem>>
      %573 = vector.broadcast %572 : f32 to vector<8x256xf32>
      %574 = arith.mulf %573, %496 : vector<8x256xf32>
      %575 = math.exp %574 : vector<8x256xf32>
      %576 = arith.index_cast %13 : i32 to index
      %c19_183 = arith.constant 19 : index
      %577 = vector.load %arg7[%576, %c19_183] : memref<256x32xf32, #tpu.memory_space<vmem>>, vector<8x1xf32>
      %c19_184 = arith.constant 19 : index
      %c0_185 = arith.constant 0 : index
      %578 = vector.load %arg9[%c19_184, %c0_185] : memref<32x256xf32, #tpu.memory_space<vmem>>, vector<1x256xf32>
      %579 = vector.broadcast %577 : vector<8x1xf32> to vector<8x256xf32>
      %580 = vector.broadcast %578 : vector<1x256xf32> to vector<8x256xf32>
      %581 = arith.mulf %579, %580 : vector<8x256xf32>
      %582 = arith.index_cast %13 : i32 to index
      %c19_186 = arith.constant 19 : index
      %583 = vector.load %arg8[%582, %c19_186] : memref<256x32xf32, #tpu.memory_space<vmem>>, vector<8x1xf32>
      %c19_187 = arith.constant 19 : index
      %c0_188 = arith.constant 0 : index
      %584 = vector.load %arg10[%c19_187, %c0_188] : memref<32x256xf32, #tpu.memory_space<vmem>>, vector<1x256xf32>
      %585 = vector.broadcast %583 : vector<8x1xf32> to vector<8x256xf32>
      %586 = vector.broadcast %584 : vector<1x256xf32> to vector<8x256xf32>
      %587 = arith.mulf %585, %586 : vector<8x256xf32>
      %588 = arith.addf %581, %587 : vector<8x256xf32>
      %589 = arith.mulf %575, %588 : vector<8x256xf32>
      %590 = arith.addf %571, %589 : vector<8x256xf32>
      %c23 = arith.constant 23 : index
      %591 = memref.load %arg3[%c23] : memref<32xf32, #tpu.memory_space<smem>>
      %592 = vector.broadcast %591 : f32 to vector<8x256xf32>
      %593 = arith.mulf %592, %496 : vector<8x256xf32>
      %594 = math.exp %593 : vector<8x256xf32>
      %595 = arith.index_cast %13 : i32 to index
      %c23_189 = arith.constant 23 : index
      %596 = vector.load %arg7[%595, %c23_189] : memref<256x32xf32, #tpu.memory_space<vmem>>, vector<8x1xf32>
      %c23_190 = arith.constant 23 : index
      %c0_191 = arith.constant 0 : index
      %597 = vector.load %arg9[%c23_190, %c0_191] : memref<32x256xf32, #tpu.memory_space<vmem>>, vector<1x256xf32>
      %598 = vector.broadcast %596 : vector<8x1xf32> to vector<8x256xf32>
      %599 = vector.broadcast %597 : vector<1x256xf32> to vector<8x256xf32>
      %600 = arith.mulf %598, %599 : vector<8x256xf32>
      %601 = arith.index_cast %13 : i32 to index
      %c23_192 = arith.constant 23 : index
      %602 = vector.load %arg8[%601, %c23_192] : memref<256x32xf32, #tpu.memory_space<vmem>>, vector<8x1xf32>
      %c23_193 = arith.constant 23 : index
      %c0_194 = arith.constant 0 : index
      %603 = vector.load %arg10[%c23_193, %c0_194] : memref<32x256xf32, #tpu.memory_space<vmem>>, vector<1x256xf32>
      %604 = vector.broadcast %602 : vector<8x1xf32> to vector<8x256xf32>
      %605 = vector.broadcast %603 : vector<1x256xf32> to vector<8x256xf32>
      %606 = arith.mulf %604, %605 : vector<8x256xf32>
      %607 = arith.addf %600, %606 : vector<8x256xf32>
      %608 = arith.mulf %594, %607 : vector<8x256xf32>
      %609 = arith.addf %590, %608 : vector<8x256xf32>
      %c27 = arith.constant 27 : index
      %610 = memref.load %arg3[%c27] : memref<32xf32, #tpu.memory_space<smem>>
      %611 = vector.broadcast %610 : f32 to vector<8x256xf32>
      %612 = arith.mulf %611, %496 : vector<8x256xf32>
      %613 = math.exp %612 : vector<8x256xf32>
      %614 = arith.index_cast %13 : i32 to index
      %c27_195 = arith.constant 27 : index
      %615 = vector.load %arg7[%614, %c27_195] : memref<256x32xf32, #tpu.memory_space<vmem>>, vector<8x1xf32>
      %c27_196 = arith.constant 27 : index
      %c0_197 = arith.constant 0 : index
      %616 = vector.load %arg9[%c27_196, %c0_197] : memref<32x256xf32, #tpu.memory_space<vmem>>, vector<1x256xf32>
      %617 = vector.broadcast %615 : vector<8x1xf32> to vector<8x256xf32>
      %618 = vector.broadcast %616 : vector<1x256xf32> to vector<8x256xf32>
      %619 = arith.mulf %617, %618 : vector<8x256xf32>
      %620 = arith.index_cast %13 : i32 to index
      %c27_198 = arith.constant 27 : index
      %621 = vector.load %arg8[%620, %c27_198] : memref<256x32xf32, #tpu.memory_space<vmem>>, vector<8x1xf32>
      %c27_199 = arith.constant 27 : index
      %c0_200 = arith.constant 0 : index
      %622 = vector.load %arg10[%c27_199, %c0_200] : memref<32x256xf32, #tpu.memory_space<vmem>>, vector<1x256xf32>
      %623 = vector.broadcast %621 : vector<8x1xf32> to vector<8x256xf32>
      %624 = vector.broadcast %622 : vector<1x256xf32> to vector<8x256xf32>
      %625 = arith.mulf %623, %624 : vector<8x256xf32>
      %626 = arith.addf %619, %625 : vector<8x256xf32>
      %627 = arith.mulf %613, %626 : vector<8x256xf32>
      %628 = arith.addf %609, %627 : vector<8x256xf32>
      %c31 = arith.constant 31 : index
      %629 = memref.load %arg3[%c31] : memref<32xf32, #tpu.memory_space<smem>>
      %630 = vector.broadcast %629 : f32 to vector<8x256xf32>
      %631 = arith.mulf %630, %496 : vector<8x256xf32>
      %632 = math.exp %631 : vector<8x256xf32>
      %633 = arith.index_cast %13 : i32 to index
      %c31_201 = arith.constant 31 : index
      %634 = vector.load %arg7[%633, %c31_201] : memref<256x32xf32, #tpu.memory_space<vmem>>, vector<8x1xf32>
      %c31_202 = arith.constant 31 : index
      %c0_203 = arith.constant 0 : index
      %635 = vector.load %arg9[%c31_202, %c0_203] : memref<32x256xf32, #tpu.memory_space<vmem>>, vector<1x256xf32>
      %636 = vector.broadcast %634 : vector<8x1xf32> to vector<8x256xf32>
      %637 = vector.broadcast %635 : vector<1x256xf32> to vector<8x256xf32>
      %638 = arith.mulf %636, %637 : vector<8x256xf32>
      %639 = arith.index_cast %13 : i32 to index
      %c31_204 = arith.constant 31 : index
      %640 = vector.load %arg8[%639, %c31_204] : memref<256x32xf32, #tpu.memory_space<vmem>>, vector<8x1xf32>
      %c31_205 = arith.constant 31 : index
      %c0_206 = arith.constant 0 : index
      %641 = vector.load %arg10[%c31_205, %c0_206] : memref<32x256xf32, #tpu.memory_space<vmem>>, vector<1x256xf32>
      %642 = vector.broadcast %640 : vector<8x1xf32> to vector<8x256xf32>
      %643 = vector.broadcast %641 : vector<1x256xf32> to vector<8x256xf32>
      %644 = arith.mulf %642, %643 : vector<8x256xf32>
      %645 = arith.addf %638, %644 : vector<8x256xf32>
      %646 = arith.mulf %632, %645 : vector<8x256xf32>
      %647 = arith.addf %628, %646 : vector<8x256xf32>
      %648 = arith.mulf %489, %647 : vector<8x256xf32>
      %649 = arith.addi %2, %13 : i32
      %650 = vector.broadcast %649 : i32 to vector<8x256xi32>
      %651 = arith.addi %10, %650 : vector<8x256xi32>
      %652 = arith.cmpi eq, %651, %9 : vector<8x256xi32>
      %653 = vector.broadcast %6 : f32 to vector<8x256xf32>
      %654 = arith.addf %648, %653 : vector<8x256xf32>
      %655 = arith.select %652, %654, %648 : vector<8x256xi1>, vector<8x256xf32>
      %656 = arith.index_cast %13 : i32 to index
      %c0_207 = arith.constant 0 : index
      %657 = vector.load %arg11[%656, %c0_207] : memref<256x256xf32, #tpu.memory_space<vmem>>, vector<8x256xf32>
      tpu.vector_store %arg11[%656, %c0_207], %655 {strides = array<i32>} : memref<256x256xf32, #tpu.memory_space<vmem>>, vector<8x256xf32>,
    }
    %c32_i32_1 = arith.constant 32 : i32
    return
  }
  func.func @transform_0(%arg0: i32, %arg1: memref<1xi32, #tpu.memory_space<smem>>, %arg2: memref<1xi32, #tpu.memory_space<smem>>) -> i32 {
    %c0_i32 = arith.constant 0 : i32
    %c0_i32_0 = arith.constant 0 : i32
    return %c0_i32 : i32
  }
  func.func @transform_1(%arg0: i32, %arg1: memref<1xi32, #tpu.memory_space<smem>>, %arg2: memref<1xi32, #tpu.memory_space<smem>>) -> i32 {
    %c0_i32 = arith.constant 0 : i32
    %c0_i32_0 = arith.constant 0 : i32
    return %c0_i32 : i32
  }
  func.func @transform_2(%arg0: i32, %arg1: memref<1xi32, #tpu.memory_space<smem>>, %arg2: memref<1xi32, #tpu.memory_space<smem>>) -> (i32, i32) {
    %0 = arith.index_cast %arg0 : i32 to index
    %1 = memref.load %arg1[%0] : memref<1xi32, #tpu.memory_space<smem>>
    %c0_i32 = arith.constant 0 : i32
    %c0_i32_0 = arith.constant 0 : i32
    return %1, %c0_i32 : i32, i32
  }
  func.func @transform_3(%arg0: i32, %arg1: memref<1xi32, #tpu.memory_space<smem>>, %arg2: memref<1xi32, #tpu.memory_space<smem>>) -> (i32, i32) {
    %0 = arith.index_cast %arg0 : i32 to index
    %1 = memref.load %arg2[%0] : memref<1xi32, #tpu.memory_space<smem>>
    %c0_i32 = arith.constant 0 : i32
    %c0_i32_0 = arith.constant 0 : i32
    return %c0_i32, %1 : i32, i32
  }
  func.func @transform_4(%arg0: i32, %arg1: memref<1xi32, #tpu.memory_space<smem>>, %arg2: memref<1xi32, #tpu.memory_space<smem>>) -> (i32, i32) {
    %0 = arith.index_cast %arg0 : i32 to index
    %1 = memref.load %arg1[%0] : memref<1xi32, #tpu.memory_space<smem>>
    %c0_i32 = arith.constant 0 : i32
    %c0_i32_0 = arith.constant 0 : i32
    return %1, %c0_i32 : i32, i32
  }
  func.func @transform_5(%arg0: i32, %arg1: memref<1xi32, #tpu.memory_space<smem>>, %arg2: memref<1xi32, #tpu.memory_space<smem>>) -> (i32, i32) {
    %0 = arith.index_cast %arg0 : i32 to index
    %1 = memref.load %arg1[%0] : memref<1xi32, #tpu.memory_space<smem>>
    %c0_i32 = arith.constant 0 : i32
    %c0_i32_0 = arith.constant 0 : i32
    return %1, %c0_i32 : i32, i32
  }
  func.func @transform_6(%arg0: i32, %arg1: memref<1xi32, #tpu.memory_space<smem>>, %arg2: memref<1xi32, #tpu.memory_space<smem>>) -> (i32, i32) {
    %0 = arith.index_cast %arg0 : i32 to index
    %1 = memref.load %arg2[%0] : memref<1xi32, #tpu.memory_space<smem>>
    %c0_i32 = arith.constant 0 : i32
    %c0_i32_0 = arith.constant 0 : i32
    return %c0_i32, %1 : i32, i32
  }
  func.func @transform_7(%arg0: i32, %arg1: memref<1xi32, #tpu.memory_space<smem>>, %arg2: memref<1xi32, #tpu.memory_space<smem>>) -> (i32, i32) {
    %0 = arith.index_cast %arg0 : i32 to index
    %1 = memref.load %arg2[%0] : memref<1xi32, #tpu.memory_space<smem>>
    %c0_i32 = arith.constant 0 : i32
    %c0_i32_0 = arith.constant 0 : i32
    return %c0_i32, %1 : i32, i32
  }
  func.func @transform_8(%arg0: i32, %arg1: memref<1xi32, #tpu.memory_space<smem>>, %arg2: memref<1xi32, #tpu.memory_space<smem>>) -> (i32, i32) {
    %0 = arith.index_cast %arg0 : i32 to index
    %1 = memref.load %arg1[%0] : memref<1xi32, #tpu.memory_space<smem>>
    %2 = arith.index_cast %arg0 : i32 to index
    %3 = memref.load %arg2[%2] : memref<1xi32, #tpu.memory_space<smem>>
    %c0_i32 = arith.constant 0 : i32
    return %1, %3 : i32, i32
  }
}

</mosaic_0001>

<llo_original>
// kernel: tpu_custom_call.1
$region0: #{tpu_custom_call.1}
  #allocation0 [shape = 'u32[]', space=smem, size = 0x4, offset = 0x4, fixed_abs, tag = 'smem constant byte address 0x4 - core index']
  #allocation1 [shape = 'u32[144,128]{1,0:T(1,128)}', space=vmem, size = 0x12000, scoped, tag = 'internal scratch']
  #allocation2 [shape = 's32[1]{0}', space=sflag, size = 0x4, scoped, tag = 'scoped memory for tpu_custom_call.1']
  #allocation3 [shape = 's32[1]{0:T(128)S(6)}', space=smem, size = 0x200, scoped, tag = 'prefetched SMEM operand 0']
  #allocation4 [shape = 's32[1]{0:T(128)S(6)}', space=smem, size = 0x200, scoped, tag = 'prefetched SMEM operand 1']
  #allocation5 [shape = 'f32[1]{0:T(128)S(6)}', space=smem, size = 0x200, scoped, tag = 'scoped memory for tpu_custom_call.1']
  %s0 = inlined_call_operand.<no memory space> [shape: s32[1], index: 0, kind: input, shape index: {}]
  %s1 = inlined_call_operand.<no memory space> [shape: s32[1], index: 1, kind: input, shape index: {}]
  %s2 = inlined_call_operand.vmem [shape: f32[32], index: 2, kind: input, shape index: {}]
  %s3 = inlined_call_operand.<no memory space> [shape: f32[1], index: 3, kind: input, shape index: {}]
  %s4 = inlined_call_operand.vmem [shape: f32[256,4], index: 4, kind: input, shape index: {}]
  %s5 = inlined_call_operand.vmem [shape: f32[4,256], index: 5, kind: input, shape index: {}]
  %s6 = inlined_call_operand.vmem [shape: f32[256,32], index: 6, kind: input, shape index: {}]
  %s7 = inlined_call_operand.vmem [shape: f32[256,32], index: 7, kind: input, shape index: {}]
  %s8 = inlined_call_operand.vmem [shape: f32[32,256], index: 8, kind: input, shape index: {}]
  %s9 = inlined_call_operand.vmem [shape: f32[32,256], index: 9, kind: input, shape index: {}]
  %s10 = inlined_call_operand.hbm [shape: f32[256,256], index: 10, kind: output, shape index: {}]
  %s11 = sld [smem:[#allocation0]]
  $region53: #{tpu_custom_call.1} parent=0
    _
  %s13 = ssub.s32 1, %s11
  %s14 = scalar_select 0, %s13, %s11
  %15 = sst [smem:[#allocation3]] %s0
  %16 = sst [smem:[#allocation4]] %s1
  %17 = sst [smem:[#allocation5]] %s3
  $region1: #{tpu_custom_call.1} parent=0
    #allocation6 [shape = 'u8[512]{0}', space=smem, size = 0x200, scoped, tag = 'input window, operand 2, single buffered']
    #allocation7 [shape = 's32[1]{0}', space=sflag, size = 0x4, scoped, tag = 'scoped memory for tpu_custom_call.1']
    #allocation8 [shape = 's32[1]{0}', space=sflag, size = 0x4, scoped, tag = 'scoped memory for tpu_custom_call.1']
    #allocation9 [shape = 'u8[262144]{0}', space=vmem, size = 0x40000, scoped, tag = 'output window, operand 0, single buffered']
    %18 = vsyncpa [#allocation8], 0
    %19 = vsyncpa [#allocation7], 0
    // Predicated region
    $region2: #{tpu_custom_call.1} parent=1 // pred_check
      _
    $region3: #{tpu_custom_call.1} parent=1 // pred_check_branch
      %21 = sbr.rel (0) target = $region5
    $region4: #{tpu_custom_call.1} parent=1 // pred_region
      %s23 = ssub.s32 16, 16
      %24 = vsyncadd [#allocation8], %s23
      %s26 = sshll.u32 %s2, 4
      %s27 = int_to_ptr.vmem [resolvable:$true] %s26
      %29 = dma.vmem_to_smem %s27, 16, [#allocation6], [#allocation8]
    $region5: #{tpu_custom_call.1} parent=1 // pred_fallthru
      _
    // Predicated region
    $region6: #{tpu_custom_call.1} parent=1 // pred_check
      _
    $region7: #{tpu_custom_call.1} parent=1 // pred_check_branch
      %31 = sbr.rel (0) target = $region9
    $region8: #{tpu_custom_call.1} parent=1 // pred_region
      _
    $region9: #{tpu_custom_call.1} parent=1 // pred_fallthru
      _
    // Predicated region
    $region10: #{tpu_custom_call.1} parent=1 // pred_check
      _
    $region11: #{tpu_custom_call.1} parent=1 // pred_check_branch
      %33 = sbr.rel (0) target = $region13
    $region12: #{tpu_custom_call.1} parent=1 // pred_region
      %s34 = sld [smem:[#allocation3]]
      %s35 = smul.u32 32, %s34
      %p36 = scmp.lt.s32.totalorder %s35, 31
      %s37 = scalar_select %p36, %s35, 31
      %s38 = smul.addr %s37, 8
      %s39 = scalar_lea.vmem %s4, %s38
      %s40 = sld [smem:[#allocation3]]
      %s41 = smul.u32 32, %s40
    $region13: #{tpu_custom_call.1} parent=1 // pred_fallthru
      _
    // Predicated region
    $region14: #{tpu_custom_call.1} parent=1 // pred_check
      _
    $region15: #{tpu_custom_call.1} parent=1 // pred_check_branch
      %43 = sbr.rel (0) target = $region17
    $region16: #{tpu_custom_call.1} parent=1 // pred_region
      %s44 = sld [smem:[#allocation4]]
      %s45 = smul.u32 2, %s44
      %p46 = scmp.lt.s32.totalorder %s45, 1
      %s47 = scalar_select %p46, %s45, 1
      %s48 = smul.addr %s47, 4
      %s49 = scalar_lea.vmem %s5, %s48
      %s50 = sld [smem:[#allocation4]]
      %s51 = smul.u32 2, %s50
    $region17: #{tpu_custom_call.1} parent=1 // pred_fallthru
      _
    // Predicated region
    $region18: #{tpu_custom_call.1} parent=1 // pred_check
      _
    $region19: #{tpu_custom_call.1} parent=1 // pred_check_branch
      %53 = sbr.rel (0) target = $region21
    $region20: #{tpu_custom_call.1} parent=1 // pred_region
      %s54 = sld [smem:[#allocation3]]
      %s55 = smul.u32 32, %s54
      %p56 = scmp.lt.s32.totalorder %s55, 31
      %s57 = scalar_select %p56, %s55, 31
      %s58 = smul.addr %s57, 8
      %s59 = scalar_lea.vmem %s6, %s58
      %s60 = sld [smem:[#allocation3]]
      %s61 = smul.u32 32, %s60
    $region21: #{tpu_custom_call.1} parent=1 // pred_fallthru
      _
    // Predicated region
    $region22: #{tpu_custom_call.1} parent=1 // pred_check
      _
    $region23: #{tpu_custom_call.1} parent=1 // pred_check_branch
      %63 = sbr.rel (0) target = $region25
    $region24: #{tpu_custom_call.1} parent=1 // pred_region
      %s64 = sld [smem:[#allocation3]]
      %s65 = smul.u32 32, %s64
      %p66 = scmp.lt.s32.totalorder %s65, 31
      %s67 = scalar_select %p66, %s65, 31
      %s68 = smul.addr %s67, 8
      %s69 = scalar_lea.vmem %s7, %s68
      %s70 = sld [smem:[#allocation3]]
      %s71 = smul.u32 32, %s70
    $region25: #{tpu_custom_call.1} parent=1 // pred_fallthru
      _
    // Predicated region
    $region26: #{tpu_custom_call.1} parent=1 // pred_check
      _
    $region27: #{tpu_custom_call.1} parent=1 // pred_check_branch
      %73 = sbr.rel (0) target = $region29
    $region28: #{tpu_custom_call.1} parent=1 // pred_region
      %s74 = sld [smem:[#allocation4]]
      %s75 = smul.u32 2, %s74
      %p76 = scmp.lt.s32.totalorder %s75, 1
      %s77 = scalar_select %p76, %s75, 1
      %s78 = smul.addr %s77, 8
      %s79 = scalar_lea.vmem %s8, %s78
      %s80 = sld [smem:[#allocation4]]
      %s81 = smul.u32 2, %s80
    $region29: #{tpu_custom_call.1} parent=1 // pred_fallthru
      _
    // Predicated region
    $region30: #{tpu_custom_call.1} parent=1 // pred_check
      _
    $region31: #{tpu_custom_call.1} parent=1 // pred_check_branch
      %83 = sbr.rel (0) target = $region33
    $region32: #{tpu_custom_call.1} parent=1 // pred_region
      %s84 = sld [smem:[#allocation4]]
      %s85 = smul.u32 2, %s84
      %p86 = scmp.lt.s32.totalorder %s85, 1
      %s87 = scalar_select %p86, %s85, 1
      %s88 = smul.addr %s87, 8
      %s89 = scalar_lea.vmem %s9, %s88
      %s90 = sld [smem:[#allocation4]]
      %s91 = smul.u32 2, %s90
    $region33: #{tpu_custom_call.1} parent=1 // pred_fallthru
      _
    // Predicated region
    $region34: #{tpu_custom_call.1} parent=1 // pred_check
      _
    $region35: #{tpu_custom_call.1} parent=1 // pred_check_branch
      %93 = sbr.rel (0) target = $region37
    $region36: #{tpu_custom_call.1} parent=1 // pred_region
      %94 = dma.done [#allocation8], 16
    $region37: #{tpu_custom_call.1} parent=1 // pred_fallthru
      _
    %95 = sfence
    %s96 = sld [smem:[#allocation3]]
    %s97 = smul.u32 32, %s96
    %p98 = scmp.lt.s32.totalorder %s97, 31
    %s99 = scalar_select %p98, %s97, 31
    %s100 = smul.addr %s99, 8
    %s101 = scalar_lea.vmem %s4, %s100
    %s102 = sld [smem:[#allocation4]]
    %s103 = smul.u32 2, %s102
    %p104 = scmp.lt.s32.totalorder %s103, 1
    %s105 = scalar_select %p104, %s103, 1
    %s106 = smul.addr %s105, 4
    %s107 = scalar_lea.vmem %s5, %s106
    %s108 = sld [smem:[#allocation3]]
    %s109 = smul.u32 32, %s108
    %p110 = scmp.lt.s32.totalorder %s109, 31
    %s111 = scalar_select %p110, %s109, 31
    %s112 = smul.addr %s111, 8
    %s113 = scalar_lea.vmem %s6, %s112
    %s114 = sld [smem:[#allocation3]]
    %s115 = smul.u32 32, %s114
    %p116 = scmp.lt.s32.totalorder %s115, 31
    %s117 = scalar_select %p116, %s115, 31
    %s118 = smul.addr %s117, 8
    %s119 = scalar_lea.vmem %s7, %s118
    %s120 = sld [smem:[#allocation4]]
    %s121 = smul.u32 2, %s120
    %p122 = scmp.lt.s32.totalorder %s121, 1
    %s123 = scalar_select %p122, %s121, 1
    %s124 = smul.addr %s123, 8
    %s125 = scalar_lea.vmem %s8, %s124
    %s126 = sld [smem:[#allocation4]]
    %s127 = smul.u32 2, %s126
    %p128 = scmp.lt.s32.totalorder %s127, 1
    %s129 = scalar_select %p128, %s127, 1
    %s130 = smul.addr %s129, 8
    %s131 = scalar_lea.vmem %s9, %s130
    %s132 = sld [smem:[#allocation3]]
    %s133 = smul.u32 32, %s132
    %p134 = scmp.lt.s32.totalorder %s133, 31
    %s135 = scalar_select %p134, %s133, 31
    %s136 = smul.addr %s135, 8
    %s137 = scalar_lea.vmem %s4, %s136
    %s138 = sld [smem:[#allocation3]]
    %s139 = smul.u32 32, %s138
    %s140 = sld [smem:[#allocation4]]
    %s141 = smul.u32 2, %s140
    %p142 = scmp.lt.s32.totalorder %s141, 1
    %s143 = scalar_select %p142, %s141, 1
    %s144 = smul.addr %s143, 4
    %s145 = scalar_lea.vmem %s5, %s144
    %s146 = sld [smem:[#allocation4]]
    %s147 = smul.u32 2, %s146
    %s148 = sld [smem:[#allocation3]]
    %s149 = smul.u32 32, %s148
    %p150 = scmp.lt.s32.totalorder %s149, 31
    %s151 = scalar_select %p150, %s149, 31
    %s152 = smul.addr %s151, 8
    %s153 = scalar_lea.vmem %s6, %s152
    %s154 = sld [smem:[#allocation3]]
    %s155 = smul.u32 32, %s154
    %s156 = sld [smem:[#allocation3]]
    %s157 = smul.u32 32, %s156
    %p158 = scmp.lt.s32.totalorder %s157, 31
    %s159 = scalar_select %p158, %s157, 31
    %s160 = smul.addr %s159, 8
    %s161 = scalar_lea.vmem %s7, %s160
    %s162 = sld [smem:[#allocation3]]
    %s163 = smul.u32 32, %s162
    %s164 = sld [smem:[#allocation4]]
    %s165 = smul.u32 2, %s164
    %p166 = scmp.lt.s32.totalorder %s165, 1
    %s167 = scalar_select %p166, %s165, 1
    %s168 = smul.addr %s167, 8
    %s169 = scalar_lea.vmem %s8, %s168
    %s170 = sld [smem:[#allocation4]]
    %s171 = smul.u32 2, %s170
    %s172 = sld [smem:[#allocation4]]
    %s173 = smul.u32 2, %s172
    %p174 = scmp.lt.s32.totalorder %s173, 1
    %s175 = scalar_select %p174, %s173, 1
    %s176 = smul.addr %s175, 8
    %s177 = scalar_lea.vmem %s9, %s176
    %s178 = sld [smem:[#allocation4]]
    %s179 = smul.u32 2, %s178
    %s180 = sld [smem:[#allocation3]]
    %s181 = sld [smem:[#allocation4]]
    %s182 = smul.u32 32, %s180
    %s183 = smul.u32 2, %s181
    %s184 = sld [smem:[#allocation3]]
    %s185 = smul.u32 %s184, 256
    %s186 = sld [smem:[#allocation4]]
    %s187 = smul.u32 %s186, 256
    %s188 = sld [smem:[#allocation5]]
    %v189 = vlaneseq
    %v190 = vand.u32 %v189, 127
    %v191 = vadd.s32 %v190, 128
    %v192 = vstv %s187
    %v193 = vadd.s32 %v190, %v192
    %v194 = vadd.s32 %v191, %v192
    %v195 = vlaneseq
    %v196 = vshrl.u32 %v195, 7
    loop: start=0, step=1, limit=32
    $region38: #{tpu_custom_call.1} parent=1 // loop_pre_header
      _
    $region39: #{tpu_custom_call.1} parent=1 // loop_header
      %s198 = sphi 0, %s202
      %p199 = scmp.ge.s32.totalorder %s198, 32
    $region40: #{tpu_custom_call.1} parent=1 // loop_header_branch
      %201 = sbr.rel (%p199) target = $region44
    $region41: #{tpu_custom_call.1} parent=1 // loop_body
      %s203 = smul.u32 %s198, 8
      %s204 = scalar_lea.vmem %s137, %s203
      %v205 = vld [vmem:[%s204] sm:$0xff]
      %v206 = vld [vmem:[%s145] ss:$4 sm:$0x3]
      %208 = vset.pattern.permute.xlu0 0
      %209 = vperm.xlu0 %208, %v205
      %v210 = vpop.permute.xlu0 %209
      %v213 = vlaneseq
      %v214 = vshrl.u32 %v213, 7
      %v215 = vsub.s32 0, %v214
      %v216 = vrot.slane %v206, %v215
      %v217 = vlaneseq
      %v218 = vshrl.u32 %v217, 7
      %v219 = vsub.s32 1, %v218
      %v220 = vrot.slane %v206, %v219
      %v223 = vsub.f32 %v210, %v216
      %v224 = vsub.f32 %v210, %v220
      %v225 = vmul.f32 %v223, %v223
      %v226 = vmul.f32 %v224, %v224
      %s227 = sld [smem:[#allocation6]]
      %v228 = vstv %s227
      %v229 = vmul.f32 %v228, %v225
      %v230 = vmul.f32 %v228, %v226
      %v231 = vmul.f32 %v229, 1.442695
      %v232 = vpow.pop %v231
      %v233 = vmul.f32 %v230, 1.442695
      %v234 = vpow.pop %v233
      %s235 = scalar_lea.vmem %s153, %s203
      %v236 = vld [vmem:[%s235] sm:$0xff]
      %v237 = vld [vmem:[%s169] ss:$8 sm:$0x3]
      %239 = vset.pattern.permute.xlu0 0
      %240 = vperm.xlu0 %239, %v236
      %v241 = vpop.permute.xlu0 %240
      %v244 = vlaneseq
      %v245 = vshrl.u32 %v244, 7
      %v246 = vsub.s32 0, %v245
      %v247 = vrot.slane %v237, %v246
      %v248 = vlaneseq
      %v249 = vshrl.u32 %v248, 7
      %v250 = vsub.s32 1, %v249
      %v251 = vrot.slane %v237, %v250
      %v254 = vmul.f32 %v241, %v247
      %v255 = vmul.f32 %v241, %v251
      %s256 = scalar_lea.vmem %s161, %s203
      %v257 = vld [vmem:[%s256] sm:$0xff]
      %v258 = vld [vmem:[%s177] ss:$8 sm:$0x3]
      %260 = vset.pattern.permute.xlu0 0
      %261 = vperm.xlu0 %260, %v257
      %v262 = vpop.permute.xlu0 %261
      %v265 = vlaneseq
      %v266 = vshrl.u32 %v265, 7
      %v267 = vsub.s32 0, %v266
      %v268 = vrot.slane %v258, %v267
      %v269 = vlaneseq
      %v270 = vshrl.u32 %v269, 7
      %v271 = vsub.s32 1, %v270
      %v272 = vrot.slane %v258, %v271
      %v275 = vmul.f32 %v262, %v268
      %v276 = vmul.f32 %v262, %v272
      %v277 = vadd.f32 %v254, %v275
      %v278 = vadd.f32 %v255, %v276
      %v279 = vmul.f32 %v232, %v277
      %v280 = vmul.f32 %v234, %v278
      %s281 = sld [smem:[#allocation6 + $0x4]]
      %v282 = vstv %s281
      %v283 = vmul.f32 %v282, %v225
      %v284 = vmul.f32 %v282, %v226
      %v285 = vmul.f32 %v283, 1.442695
      %v286 = vpow.pop %v285
      %v287 = vmul.f32 %v284, 1.442695
      %v288 = vpow.pop %v287
      %s289 = scalar_lea.vmem %s169, 4
      %v290 = vld [vmem:[%s289] ss:$8 sm:$0x3]
      %291 = vset.pattern.permute.xlu0 4
      %292 = vperm.xlu0 %291, %v236
      %v293 = vpop.permute.xlu0 %292
      %v296 = vlaneseq
      %v297 = vshrl.u32 %v296, 7
      %v298 = vsub.s32 0, %v297
      %v299 = vrot.slane %v290, %v298
      %v300 = vlaneseq
      %v301 = vshrl.u32 %v300, 7
      %v302 = vsub.s32 1, %v301
      %v303 = vrot.slane %v290, %v302
      %v306 = vmul.f32 %v293, %v299
      %v307 = vmul.f32 %v293, %v303
      %s308 = scalar_lea.vmem %s177, 4
      %v309 = vld [vmem:[%s308] ss:$8 sm:$0x3]
      %310 = vset.pattern.permute.xlu0 4
      %311 = vperm.xlu0 %310, %v257
      %v312 = vpop.permute.xlu0 %311
      %v315 = vlaneseq
      %v316 = vshrl.u32 %v315, 7
      %v317 = vsub.s32 0, %v316
      %v318 = vrot.slane %v309, %v317
      %v319 = vlaneseq
      %v320 = vshrl.u32 %v319, 7
      %v321 = vsub.s32 1, %v320
      %v322 = vrot.slane %v309, %v321
      %v325 = vmul.f32 %v312, %v318
      %v326 = vmul.f32 %v312, %v322
      %v327 = vadd.f32 %v306, %v325
      %v328 = vadd.f32 %v307, %v326
      %v329 = vmul.f32 %v286, %v327
      %v330 = vmul.f32 %v288, %v328
      %v331 = vadd.f32 %v279, %v329
      %v332 = vadd.f32 %v280, %v330
      %s333 = sld [smem:[#allocation6 + $0x8]]
      %v334 = vstv %s333
      %v335 = vmul.f32 %v334, %v225
      %v336 = vmul.f32 %v334, %v226
      %v337 = vmul.f32 %v335, 1.442695
      %v338 = vpow.pop %v337
      %v339 = vmul.f32 %v336, 1.442695
      %v340 = vpow.pop %v339
      %s341 = scalar_lea.vmem %s169, 16
      %v342 = vld [vmem:[%s341] ss:$8 sm:$0x3]
      %343 = vset.pattern.permute.xlu0 8
      %344 = vperm.xlu0 %343, %v236
      %v345 = vpop.permute.xlu0 %344
      %v348 = vlaneseq
      %v349 = vshrl.u32 %v348, 7
      %v350 = vsub.s32 0, %v349
      %v351 = vrot.slane %v342, %v350
      %v352 = vlaneseq
      %v353 = vshrl.u32 %v352, 7
      %v354 = vsub.s32 1, %v353
      %v355 = vrot.slane %v342, %v354
      %v358 = vmul.f32 %v345, %v351
      %v359 = vmul.f32 %v345, %v355
      %s360 = scalar_lea.vmem %s177, 16
      %v361 = vld [vmem:[%s360] ss:$8 sm:$0x3]
      %362 = vset.pattern.permute.xlu0 8
      %363 = vperm.xlu0 %362, %v257
      %v364 = vpop.permute.xlu0 %363
      %v367 = vlaneseq
      %v368 = vshrl.u32 %v367, 7
      %v369 = vsub.s32 0, %v368
      %v370 = vrot.slane %v361, %v369
      %v371 = vlaneseq
      %v372 = vshrl.u32 %v371, 7
      %v373 = vsub.s32 1, %v372
      %v374 = vrot.slane %v361, %v373
      %v377 = vmul.f32 %v364, %v370
      %v378 = vmul.f32 %v364, %v374
      %v379 = vadd.f32 %v358, %v377
      %v380 = vadd.f32 %v359, %v378
      %v381 = vmul.f32 %v338, %v379
      %v382 = vmul.f32 %v340, %v380
      %v383 = vadd.f32 %v331, %v381
      %v384 = vadd.f32 %v332, %v382
      %s385 = sld [smem:[#allocation6 + $0xc]]
      %v386 = vstv %s385
      %v387 = vmul.f32 %v386, %v225
      %v388 = vmul.f32 %v386, %v226
      %v389 = vmul.f32 %v387, 1.442695
      %v390 = vpow.pop %v389
      %v391 = vmul.f32 %v388, 1.442695
      %v392 = vpow.pop %v391
      %s393 = scalar_lea.vmem %s169, 20
      %v394 = vld [vmem:[%s393] ss:$8 sm:$0x3]
      %395 = vset.pattern.permute.xlu0 12
      %396 = vperm.xlu0 %395, %v236
      %v397 = vpop.permute.xlu0 %396
      %v400 = vlaneseq
      %v401 = vshrl.u32 %v400, 7
      %v402 = vsub.s32 0, %v401
      %v403 = vrot.slane %v394, %v402
      %v404 = vlaneseq
      %v405 = vshrl.u32 %v404, 7
      %v406 = vsub.s32 1, %v405
      %v407 = vrot.slane %v394, %v406
      %v410 = vmul.f32 %v397, %v403
      %v411 = vmul.f32 %v397, %v407
      %s412 = scalar_lea.vmem %s177, 20
      %v413 = vld [vmem:[%s412] ss:$8 sm:$0x3]
      %414 = vset.pattern.permute.xlu0 12
      %415 = vperm.xlu0 %414, %v257
      %v416 = vpop.permute.xlu0 %415
      %v419 = vlaneseq
      %v420 = vshrl.u32 %v419, 7
      %v421 = vsub.s32 0, %v420
      %v422 = vrot.slane %v413, %v421
      %v423 = vlaneseq
      %v424 = vshrl.u32 %v423, 7
      %v425 = vsub.s32 1, %v424
      %v426 = vrot.slane %v413, %v425
      %v429 = vmul.f32 %v416, %v422
      %v430 = vmul.f32 %v416, %v426
      %v431 = vadd.f32 %v410, %v429
      %v432 = vadd.f32 %v411, %v430
      %v433 = vmul.f32 %v390, %v431
      %v434 = vmul.f32 %v392, %v432
      %v435 = vadd.f32 %v383, %v433
      %v436 = vadd.f32 %v384, %v434
      %s437 = sld [smem:[#allocation6 + $0x10]]
      %v438 = vstv %s437
      %v439 = vmul.f32 %v438, %v225
      %v440 = vmul.f32 %v438, %v226
      %v441 = vmul.f32 %v439, 1.442695
      %v442 = vpow.pop %v441
      %v443 = vmul.f32 %v440, 1.442695
      %v444 = vpow.pop %v443
      %s445 = scalar_lea.vmem %s169, 32
      %v446 = vld [vmem:[%s445] ss:$8 sm:$0x3]
      %447 = vset.pattern.permute.xlu0 16
      %448 = vperm.xlu0 %447, %v236
      %v449 = vpop.permute.xlu0 %448
      %v452 = vlaneseq
      %v453 = vshrl.u32 %v452, 7
      %v454 = vsub.s32 0, %v453
      %v455 = vrot.slane %v446, %v454
      %v456 = vlaneseq
      %v457 = vshrl.u32 %v456, 7
      %v458 = vsub.s32 1, %v457
      %v459 = vrot.slane %v446, %v458
      %v462 = vmul.f32 %v449, %v455
      %v463 = vmul.f32 %v449, %v459
      %s464 = scalar_lea.vmem %s177, 32
      %v465 = vld [vmem:[%s464] ss:$8 sm:$0x3]
      %466 = vset.pattern.permute.xlu0 16
      %467 = vperm.xlu0 %466, %v257
      %v468 = vpop.permute.xlu0 %467
      %v471 = vlaneseq
      %v472 = vshrl.u32 %v471, 7
      %v473 = vsub.s32 0, %v472
      %v474 = vrot.slane %v465, %v473
      %v475 = vlaneseq
      %v476 = vshrl.u32 %v475, 7
      %v477 = vsub.s32 1, %v476
      %v478 = vrot.slane %v465, %v477
      %v481 = vmul.f32 %v468, %v474
      %v482 = vmul.f32 %v468, %v478
      %v483 = vadd.f32 %v462, %v481
      %v484 = vadd.f32 %v463, %v482
      %v485 = vmul.f32 %v442, %v483
      %v486 = vmul.f32 %v444, %v484
      %v487 = vadd.f32 %v435, %v485
      %v488 = vadd.f32 %v436, %v486
      %s489 = sld [smem:[#allocation6 + $0x14]]
      %v490 = vstv %s489
      %v491 = vmul.f32 %v490, %v225
      %v492 = vmul.f32 %v490, %v226
      %v493 = vmul.f32 %v491, 1.442695
      %v494 = vpow.pop %v493
      %v495 = vmul.f32 %v492, 1.442695
      %v496 = vpow.pop %v495
      %s497 = scalar_lea.vmem %s169, 36
      %v498 = vld [vmem:[%s497] ss:$8 sm:$0x3]
      %499 = vset.pattern.permute.xlu0 20
      %500 = vperm.xlu0 %499, %v236
      %v501 = vpop.permute.xlu0 %500
      %v504 = vlaneseq
      %v505 = vshrl.u32 %v504, 7
      %v506 = vsub.s32 0, %v505
      %v507 = vrot.slane %v498, %v506
      %v508 = vlaneseq
      %v509 = vshrl.u32 %v508, 7
      %v510 = vsub.s32 1, %v509
      %v511 = vrot.slane %v498, %v510
      %v514 = vmul.f32 %v501, %v507
      %v515 = vmul.f32 %v501, %v511
      %s516 = scalar_lea.vmem %s177, 36
      %v517 = vld [vmem:[%s516] ss:$8 sm:$0x3]
      %518 = vset.pattern.permute.xlu0 20
      %519 = vperm.xlu0 %518, %v257
      %v520 = vpop.permute.xlu0 %519
      %v523 = vlaneseq
      %v524 = vshrl.u32 %v523, 7
      %v525 = vsub.s32 0, %v524
      %v526 = vrot.slane %v517, %v525
      %v527 = vlaneseq
      %v528 = vshrl.u32 %v527, 7
      %v529 = vsub.s32 1, %v528
      %v530 = vrot.slane %v517, %v529
      %v533 = vmul.f32 %v520, %v526
      %v534 = vmul.f32 %v520, %v530
      %v535 = vadd.f32 %v514, %v533
      %v536 = vadd.f32 %v515, %v534
      %v537 = vmul.f32 %v494, %v535
      %v538 = vmul.f32 %v496, %v536
      %v539 = vadd.f32 %v487, %v537
      %v540 = vadd.f32 %v488, %v538
      %s541 = sld [smem:[#allocation6 + $0x18]]
      %v542 = vstv %s541
      %v543 = vmul.f32 %v542, %v225
      %v544 = vmul.f32 %v542, %v226
      %v545 = vmul.f32 %v543, 1.442695
      %v546 = vpow.pop %v545
      %v547 = vmul.f32 %v544, 1.442695
      %v548 = vpow.pop %v547
      %s549 = scalar_lea.vmem %s169, 48
      %v550 = vld [vmem:[%s549] ss:$8 sm:$0x3]
      %551 = vset.pattern.permute.xlu0 24
      %552 = vperm.xlu0 %551, %v236
      %v553 = vpop.permute.xlu0 %552
      %v556 = vlaneseq
      %v557 = vshrl.u32 %v556, 7
      %v558 = vsub.s32 0, %v557
      %v559 = vrot.slane %v550, %v558
      %v560 = vlaneseq
      %v561 = vshrl.u32 %v560, 7
      %v562 = vsub.s32 1, %v561
      %v563 = vrot.slane %v550, %v562
      %v566 = vmul.f32 %v553, %v559
      %v567 = vmul.f32 %v553, %v563
      %s568 = scalar_lea.vmem %s177, 48
      %v569 = vld [vmem:[%s568] ss:$8 sm:$0x3]
      %570 = vset.pattern.permute.xlu0 24
      %571 = vperm.xlu0 %570, %v257
      %v572 = vpop.permute.xlu0 %571
      %v575 = vlaneseq
      %v576 = vshrl.u32 %v575, 7
      %v577 = vsub.s32 0, %v576
      %v578 = vrot.slane %v569, %v577
      %v579 = vlaneseq
      %v580 = vshrl.u32 %v579, 7
      %v581 = vsub.s32 1, %v580
      %v582 = vrot.slane %v569, %v581
      %v585 = vmul.f32 %v572, %v578
      %v586 = vmul.f32 %v572, %v582
      %v587 = vadd.f32 %v566, %v585
      %v588 = vadd.f32 %v567, %v586
      %v589 = vmul.f32 %v546, %v587
      %v590 = vmul.f32 %v548, %v588
      %v591 = vadd.f32 %v539, %v589
      %v592 = vadd.f32 %v540, %v590
      %s593 = sld [smem:[#allocation6 + $0x1c]]
      %v594 = vstv %s593
      %v595 = vmul.f32 %v594, %v225
      %v596 = vmul.f32 %v594, %v226
      %v597 = vmul.f32 %v595, 1.442695
      %v598 = vpow.pop %v597
      %v599 = vmul.f32 %v596, 1.442695
      %v600 = vpow.pop %v599
      %s601 = scalar_lea.vmem %s169, 52
      %v602 = vld [vmem:[%s601] ss:$8 sm:$0x3]
      %603 = vset.pattern.permute.xlu0 28
      %604 = vperm.xlu0 %603, %v236
      %v605 = vpop.permute.xlu0 %604
      %v608 = vlaneseq
      %v609 = vshrl.u32 %v608, 7
      %v610 = vsub.s32 0, %v609
      %v611 = vrot.slane %v602, %v610
      %v612 = vlaneseq
      %v613 = vshrl.u32 %v612, 7
      %v614 = vsub.s32 1, %v613
      %v615 = vrot.slane %v602, %v614
      %v618 = vmul.f32 %v605, %v611
      %v619 = vmul.f32 %v605, %v615
      %s620 = scalar_lea.vmem %s177, 52
      %v621 = vld [vmem:[%s620] ss:$8 sm:$0x3]
      %622 = vset.pattern.permute.xlu0 28
      %623 = vperm.xlu0 %622, %v257
      %v624 = vpop.permute.xlu0 %623
      %v627 = vlaneseq
      %v628 = vshrl.u32 %v627, 7
      %v629 = vsub.s32 0, %v628
      %v630 = vrot.slane %v621, %v629
      %v631 = vlaneseq
      %v632 = vshrl.u32 %v631, 7
      %v633 = vsub.s32 1, %v632
      %v634 = vrot.slane %v621, %v633
      %v637 = vmul.f32 %v624, %v630
      %v638 = vmul.f32 %v624, %v634
      %v639 = vadd.f32 %v618, %v637
      %v640 = vadd.f32 %v619, %v638
      %v641 = vmul.f32 %v598, %v639
      %v642 = vmul.f32 %v600, %v640
      %v643 = vadd.f32 %v591, %v641
      %v644 = vadd.f32 %v592, %v642
      %s645 = scalar_lea.vmem %s145, 1
      %v646 = vld [vmem:[%s645] ss:$4 sm:$0x3]
      %647 = vset.pattern.permute.xlu0 1
      %648 = vperm.xlu0 %647, %v205
      %v649 = vpop.permute.xlu0 %648
      %v652 = vlaneseq
      %v653 = vshrl.u32 %v652, 7
      %v654 = vsub.s32 0, %v653
      %v655 = vrot.slane %v646, %v654
      %v656 = vlaneseq
      %v657 = vshrl.u32 %v656, 7
      %v658 = vsub.s32 1, %v657
      %v659 = vrot.slane %v646, %v658
      %v662 = vsub.f32 %v649, %v655
      %v663 = vsub.f32 %v649, %v659
      %v664 = vmul.f32 %v662, %v662
      %v665 = vmul.f32 %v663, %v663
      %s666 = sld [smem:[#allocation6 + $0x1]]
      %v667 = vstv %s666
      %v668 = vmul.f32 %v667, %v664
      %v669 = vmul.f32 %v667, %v665
      %v670 = vmul.f32 %v668, 1.442695
      %v671 = vpow.pop %v670
      %v672 = vmul.f32 %v669, 1.442695
      %v673 = vpow.pop %v672
      %s674 = scalar_lea.vmem %s169, 1
      %v675 = vld [vmem:[%s674] ss:$8 sm:$0x3]
      %676 = vset.pattern.permute.xlu0 1
      %677 = vperm.xlu0 %676, %v236
      %v678 = vpop.permute.xlu0 %677
      %v681 = vlaneseq
      %v682 = vshrl.u32 %v681, 7
      %v683 = vsub.s32 0, %v682
      %v684 = vrot.slane %v675, %v683
      %v685 = vlaneseq
      %v686 = vshrl.u32 %v685, 7
      %v687 = vsub.s32 1, %v686
      %v688 = vrot.slane %v675, %v687
      %v691 = vmul.f32 %v678, %v684
      %v692 = vmul.f32 %v678, %v688
      %s693 = scalar_lea.vmem %s177, 1
      %v694 = vld [vmem:[%s693] ss:$8 sm:$0x3]
      %695 = vset.pattern.permute.xlu0 1
      %696 = vperm.xlu0 %695, %v257
      %v697 = vpop.permute.xlu0 %696
      %v700 = vlaneseq
      %v701 = vshrl.u32 %v700, 7
      %v702 = vsub.s32 0, %v701
      %v703 = vrot.slane %v694, %v702
      %v704 = vlaneseq
      %v705 = vshrl.u32 %v704, 7
      %v706 = vsub.s32 1, %v705
      %v707 = vrot.slane %v694, %v706
      %v710 = vmul.f32 %v697, %v703
      %v711 = vmul.f32 %v697, %v707
      %v712 = vadd.f32 %v691, %v710
      %v713 = vadd.f32 %v692, %v711
      %v714 = vmul.f32 %v671, %v712
      %v715 = vmul.f32 %v673, %v713
      %s716 = sld [smem:[#allocation6 + $0x5]]
      %v717 = vstv %s716
      %v718 = vmul.f32 %v717, %v664
      %v719 = vmul.f32 %v717, %v665
      %v720 = vmul.f32 %v718, 1.442695
      %v721 = vpow.pop %v720
      %v722 = vmul.f32 %v719, 1.442695
      %v723 = vpow.pop %v722
      %s724 = scalar_lea.vmem %s169, 5
      %v725 = vld [vmem:[%s724] ss:$8 sm:$0x3]
      %726 = vset.pattern.permute.xlu0 5
      %727 = vperm.xlu0 %726, %v236
      %v728 = vpop.permute.xlu0 %727
      %v731 = vlaneseq
      %v732 = vshrl.u32 %v731, 7
      %v733 = vsub.s32 0, %v732
      %v734 = vrot.slane %v725, %v733
      %v735 = vlaneseq
      %v736 = vshrl.u32 %v735, 7
      %v737 = vsub.s32 1, %v736
      %v738 = vrot.slane %v725, %v737
      %v741 = vmul.f32 %v728, %v734
      %v742 = vmul.f32 %v728, %v738
      %s743 = scalar_lea.vmem %s177, 5
      %v744 = vld [vmem:[%s743] ss:$8 sm:$0x3]
      %745 = vset.pattern.permute.xlu0 5
      %746 = vperm.xlu0 %745, %v257
      %v747 = vpop.permute.xlu0 %746
      %v750 = vlaneseq
      %v751 = vshrl.u32 %v750, 7
      %v752 = vsub.s32 0, %v751
      %v753 = vrot.slane %v744, %v752
      %v754 = vlaneseq
      %v755 = vshrl.u32 %v754, 7
      %v756 = vsub.s32 1, %v755
      %v757 = vrot.slane %v744, %v756
      %v760 = vmul.f32 %v747, %v753
      %v761 = vmul.f32 %v747, %v757
      %v762 = vadd.f32 %v741, %v760
      %v763 = vadd.f32 %v742, %v761
      %v764 = vmul.f32 %v721, %v762
      %v765 = vmul.f32 %v723, %v763
      %v766 = vadd.f32 %v714, %v764
      %v767 = vadd.f32 %v715, %v765
      %s768 = sld [smem:[#allocation6 + $0x9]]
      %v769 = vstv %s768
      %v770 = vmul.f32 %v769, %v664
      %v771 = vmul.f32 %v769, %v665
      %v772 = vmul.f32 %v770, 1.442695
      %v773 = vpow.pop %v772
      %v774 = vmul.f32 %v771, 1.442695
      %v775 = vpow.pop %v774
      %s776 = scalar_lea.vmem %s169, 17
      %v777 = vld [vmem:[%s776] ss:$8 sm:$0x3]
      %778 = vset.pattern.permute.xlu0 9
      %779 = vperm.xlu0 %778, %v236
      %v780 = vpop.permute.xlu0 %779
      %v783 = vlaneseq
      %v784 = vshrl.u32 %v783, 7
      %v785 = vsub.s32 0, %v784
      %v786 = vrot.slane %v777, %v785
      %v787 = vlaneseq
      %v788 = vshrl.u32 %v787, 7
      %v789 = vsub.s32 1, %v788
      %v790 = vrot.slane %v777, %v789
      %v793 = vmul.f32 %v780, %v786
      %v794 = vmul.f32 %v780, %v790
      %s795 = scalar_lea.vmem %s177, 17
      %v796 = vld [vmem:[%s795] ss:$8 sm:$0x3]
      %797 = vset.pattern.permute.xlu0 9
      %798 = vperm.xlu0 %797, %v257
      %v799 = vpop.permute.xlu0 %798
      %v802 = vlaneseq
      %v803 = vshrl.u32 %v802, 7
      %v804 = vsub.s32 0, %v803
      %v805 = vrot.slane %v796, %v804
      %v806 = vlaneseq
      %v807 = vshrl.u32 %v806, 7
      %v808 = vsub.s32 1, %v807
      %v809 = vrot.slane %v796, %v808
      %v812 = vmul.f32 %v799, %v805
      %v813 = vmul.f32 %v799, %v809
      %v814 = vadd.f32 %v793, %v812
      %v815 = vadd.f32 %v794, %v813
      %v816 = vmul.f32 %v773, %v814
      %v817 = vmul.f32 %v775, %v815
      %v818 = vadd.f32 %v766, %v816
      %v819 = vadd.f32 %v767, %v817
      %s820 = sld [smem:[#allocation6 + $0xd]]
      %v821 = vstv %s820
      %v822 = vmul.f32 %v821, %v664
      %v823 = vmul.f32 %v821, %v665
      %v824 = vmul.f32 %v822, 1.442695
      %v825 = vpow.pop %v824
      %v826 = vmul.f32 %v823, 1.442695
      %v827 = vpow.pop %v826
      %s828 = scalar_lea.vmem %s169, 21
      %v829 = vld [vmem:[%s828] ss:$8 sm:$0x3]
      %830 = vset.pattern.permute.xlu0 13
      %831 = vperm.xlu0 %830, %v236
      %v832 = vpop.permute.xlu0 %831
      %v835 = vlaneseq
      %v836 = vshrl.u32 %v835, 7
      %v837 = vsub.s32 0, %v836
      %v838 = vrot.slane %v829, %v837
      %v839 = vlaneseq
      %v840 = vshrl.u32 %v839, 7
      %v841 = vsub.s32 1, %v840
      %v842 = vrot.slane %v829, %v841
      %v845 = vmul.f32 %v832, %v838
      %v846 = vmul.f32 %v832, %v842
      %s847 = scalar_lea.vmem %s177, 21
      %v848 = vld [vmem:[%s847] ss:$8 sm:$0x3]
      %849 = vset.pattern.permute.xlu0 13
      %850 = vperm.xlu0 %849, %v257
      %v851 = vpop.permute.xlu0 %850
      %v854 = vlaneseq
      %v855 = vshrl.u32 %v854, 7
      %v856 = vsub.s32 0, %v855
      %v857 = vrot.slane %v848, %v856
      %v858 = vlaneseq
      %v859 = vshrl.u32 %v858, 7
      %v860 = vsub.s32 1, %v859
      %v861 = vrot.slane %v848, %v860
      %v864 = vmul.f32 %v851, %v857
      %v865 = vmul.f32 %v851, %v861
      %v866 = vadd.f32 %v845, %v864
      %v867 = vadd.f32 %v846, %v865
      %v868 = vmul.f32 %v825, %v866
      %v869 = vmul.f32 %v827, %v867
      %v870 = vadd.f32 %v818, %v868
      %v871 = vadd.f32 %v819, %v869
      %s872 = sld [smem:[#allocation6 + $0x11]]
      %v873 = vstv %s872
      %v874 = vmul.f32 %v873, %v664
      %v875 = vmul.f32 %v873, %v665
      %v876 = vmul.f32 %v874, 1.442695
      %v877 = vpow.pop %v876
      %v878 = vmul.f32 %v875, 1.442695
      %v879 = vpow.pop %v878
      %s880 = scalar_lea.vmem %s169, 33
      %v881 = vld [vmem:[%s880] ss:$8 sm:$0x3]
      %882 = vset.pattern.permute.xlu0 17
      %883 = vperm.xlu0 %882, %v236
      %v884 = vpop.permute.xlu0 %883
      %v887 = vlaneseq
      %v888 = vshrl.u32 %v887, 7
      %v889 = vsub.s32 0, %v888
      %v890 = vrot.slane %v881, %v889
      %v891 = vlaneseq
      %v892 = vshrl.u32 %v891, 7
      %v893 = vsub.s32 1, %v892
      %v894 = vrot.slane %v881, %v893
      %v897 = vmul.f32 %v884, %v890
      %v898 = vmul.f32 %v884, %v894
      %s899 = scalar_lea.vmem %s177, 33
      %v900 = vld [vmem:[%s899] ss:$8 sm:$0x3]
      %901 = vset.pattern.permute.xlu0 17
      %902 = vperm.xlu0 %901, %v257
      %v903 = vpop.permute.xlu0 %902
      %v906 = vlaneseq
      %v907 = vshrl.u32 %v906, 7
      %v908 = vsub.s32 0, %v907
      %v909 = vrot.slane %v900, %v908
      %v910 = vlaneseq
      %v911 = vshrl.u32 %v910, 7
      %v912 = vsub.s32 1, %v911
      %v913 = vrot.slane %v900, %v912
      %v916 = vmul.f32 %v903, %v909
      %v917 = vmul.f32 %v903, %v913
      %v918 = vadd.f32 %v897, %v916
      %v919 = vadd.f32 %v898, %v917
      %v920 = vmul.f32 %v877, %v918
      %v921 = vmul.f32 %v879, %v919
      %v922 = vadd.f32 %v870, %v920
      %v923 = vadd.f32 %v871, %v921
      %s924 = sld [smem:[#allocation6 + $0x15]]
      %v925 = vstv %s924
      %v926 = vmul.f32 %v925, %v664
      %v927 = vmul.f32 %v925, %v665
      %v928 = vmul.f32 %v926, 1.442695
      %v929 = vpow.pop %v928
      %v930 = vmul.f32 %v927, 1.442695
      %v931 = vpow.pop %v930
      %s932 = scalar_lea.vmem %s169, 37
      %v933 = vld [vmem:[%s932] ss:$8 sm:$0x3]
      %934 = vset.pattern.permute.xlu0 21
      %935 = vperm.xlu0 %934, %v236
      %v936 = vpop.permute.xlu0 %935
      %v939 = vlaneseq
      %v940 = vshrl.u32 %v939, 7
      %v941 = vsub.s32 0, %v940
      %v942 = vrot.slane %v933, %v941
      %v943 = vlaneseq
      %v944 = vshrl.u32 %v943, 7
      %v945 = vsub.s32 1, %v944
      %v946 = vrot.slane %v933, %v945
      %v949 = vmul.f32 %v936, %v942
      %v950 = vmul.f32 %v936, %v946
      %s951 = scalar_lea.vmem %s177, 37
      %v952 = vld [vmem:[%s951] ss:$8 sm:$0x3]
      %953 = vset.pattern.permute.xlu0 21
      %954 = vperm.xlu0 %953, %v257
      %v955 = vpop.permute.xlu0 %954
      %v958 = vlaneseq
      %v959 = vshrl.u32 %v958, 7
      %v960 = vsub.s32 0, %v959
      %v961 = vrot.slane %v952, %v960
      %v962 = vlaneseq
      %v963 = vshrl.u32 %v962, 7
      %v964 = vsub.s32 1, %v963
      %v965 = vrot.slane %v952, %v964
      %v968 = vmul.f32 %v955, %v961
      %v969 = vmul.f32 %v955, %v965
      %v970 = vadd.f32 %v949, %v968
      %v971 = vadd.f32 %v950, %v969
      %v972 = vmul.f32 %v929, %v970
      %v973 = vmul.f32 %v931, %v971
      %v974 = vadd.f32 %v922, %v972
      %v975 = vadd.f32 %v923, %v973
      %s976 = sld [smem:[#allocation6 + $0x19]]
      %v977 = vstv %s976
      %v978 = vmul.f32 %v977, %v664
      %v979 = vmul.f32 %v977, %v665
      %v980 = vmul.f32 %v978, 1.442695
      %v981 = vpow.pop %v980
      %v982 = vmul.f32 %v979, 1.442695
      %v983 = vpow.pop %v982
      %s984 = scalar_lea.vmem %s169, 49
      %v985 = vld [vmem:[%s984] ss:$8 sm:$0x3]
      %986 = vset.pattern.permute.xlu0 25
      %987 = vperm.xlu0 %986, %v236
      %v988 = vpop.permute.xlu0 %987
      %v991 = vlaneseq
      %v992 = vshrl.u32 %v991, 7
      %v993 = vsub.s32 0, %v992
      %v994 = vrot.slane %v985, %v993
      %v995 = vlaneseq
      %v996 = vshrl.u32 %v995, 7
      %v997 = vsub.s32 1, %v996
      %v998 = vrot.slane %v985, %v997
      %v1001 = vmul.f32 %v988, %v994
      %v1002 = vmul.f32 %v988, %v998
      %s1003 = scalar_lea.vmem %s177, 49
      %v1004 = vld [vmem:[%s1003] ss:$8 sm:$0x3]
      %1005 = vset.pattern.permute.xlu0 25
      %1006 = vperm.xlu0 %1005, %v257
      %v1007 = vpop.permute.xlu0 %1006
      %v1010 = vlaneseq
      %v1011 = vshrl.u32 %v1010, 7
      %v1012 = vsub.s32 0, %v1011
      %v1013 = vrot.slane %v1004, %v1012
      %v1014 = vlaneseq
      %v1015 = vshrl.u32 %v1014, 7
      %v1016 = vsub.s32 1, %v1015
      %v1017 = vrot.slane %v1004, %v1016
      %v1020 = vmul.f32 %v1007, %v1013
      %v1021 = vmul.f32 %v1007, %v1017
      %v1022 = vadd.f32 %v1001, %v1020
      %v1023 = vadd.f32 %v1002, %v1021
      %v1024 = vmul.f32 %v981, %v1022
      %v1025 = vmul.f32 %v983, %v1023
      %v1026 = vadd.f32 %v974, %v1024
      %v1027 = vadd.f32 %v975, %v1025
      %s1028 = sld [smem:[#allocation6 + $0x1d]]
      %v1029 = vstv %s1028
      %v1030 = vmul.f32 %v1029, %v664
      %v1031 = vmul.f32 %v1029, %v665
      %v1032 = vmul.f32 %v1030, 1.442695
      %v1033 = vpow.pop %v1032
      %v1034 = vmul.f32 %v1031, 1.442695
      %v1035 = vpow.pop %v1034
      %s1036 = scalar_lea.vmem %s169, 53
      %v1037 = vld [vmem:[%s1036] ss:$8 sm:$0x3]
      %1038 = vset.pattern.permute.xlu0 29
      %1039 = vperm.xlu0 %1038, %v236
      %v1040 = vpop.permute.xlu0 %1039
      %v1043 = vlaneseq
      %v1044 = vshrl.u32 %v1043, 7
      %v1045 = vsub.s32 0, %v1044
      %v1046 = vrot.slane %v1037, %v1045
      %v1047 = vlaneseq
      %v1048 = vshrl.u32 %v1047, 7
      %v1049 = vsub.s32 1, %v1048
      %v1050 = vrot.slane %v1037, %v1049
      %v1053 = vmul.f32 %v1040, %v1046
      %v1054 = vmul.f32 %v1040, %v1050
      %s1055 = scalar_lea.vmem %s177, 53
      %v1056 = vld [vmem:[%s1055] ss:$8 sm:$0x3]
      %1057 = vset.pattern.permute.xlu0 29
      %1058 = vperm.xlu0 %1057, %v257
      %v1059 = vpop.permute.xlu0 %1058
      %v1062 = vlaneseq
      %v1063 = vshrl.u32 %v1062, 7
      %v1064 = vsub.s32 0, %v1063
      %v1065 = vrot.slane %v1056, %v1064
      %v1066 = vlaneseq
      %v1067 = vshrl.u32 %v1066, 7
      %v1068 = vsub.s32 1, %v1067
      %v1069 = vrot.slane %v1056, %v1068
      %v1072 = vmul.f32 %v1059, %v1065
      %v1073 = vmul.f32 %v1059, %v1069
      %v1074 = vadd.f32 %v1053, %v1072
      %v1075 = vadd.f32 %v1054, %v1073
      %v1076 = vmul.f32 %v1033, %v1074
      %v1077 = vmul.f32 %v1035, %v1075
      %v1078 = vadd.f32 %v1026, %v1076
      %v1079 = vadd.f32 %v1027, %v1077
      %v1080 = vmul.f32 %v643, %v1078
      %v1081 = vmul.f32 %v644, %v1079
      %s1082 = scalar_lea.vmem %s145, 2
      %v1083 = vld [vmem:[%s1082] ss:$4 sm:$0x3]
      %1084 = vset.pattern.permute.xlu0 2
      %1085 = vperm.xlu0 %1084, %v205
      %v1086 = vpop.permute.xlu0 %1085
      %v1089 = vlaneseq
      %v1090 = vshrl.u32 %v1089, 7
      %v1091 = vsub.s32 0, %v1090
      %v1092 = vrot.slane %v1083, %v1091
      %v1093 = vlaneseq
      %v1094 = vshrl.u32 %v1093, 7
      %v1095 = vsub.s32 1, %v1094
      %v1096 = vrot.slane %v1083, %v1095
      %v1099 = vsub.f32 %v1086, %v1092
      %v1100 = vsub.f32 %v1086, %v1096
      %v1101 = vmul.f32 %v1099, %v1099
      %v1102 = vmul.f32 %v1100, %v1100
      %s1103 = sld [smem:[#allocation6 + $0x2]]
      %v1104 = vstv %s1103
      %v1105 = vmul.f32 %v1104, %v1101
      %v1106 = vmul.f32 %v1104, %v1102
      %v1107 = vmul.f32 %v1105, 1.442695
      %v1108 = vpow.pop %v1107
      %v1109 = vmul.f32 %v1106, 1.442695
      %v1110 = vpow.pop %v1109
      %s1111 = scalar_lea.vmem %s169, 2
      %v1112 = vld [vmem:[%s1111] ss:$8 sm:$0x3]
      %1113 = vset.pattern.permute.xlu0 2
      %1114 = vperm.xlu0 %1113, %v236
      %v1115 = vpop.permute.xlu0 %1114
      %v1118 = vlaneseq
      %v1119 = vshrl.u32 %v1118, 7
      %v1120 = vsub.s32 0, %v1119
      %v1121 = vrot.slane %v1112, %v1120
      %v1122 = vlaneseq
      %v1123 = vshrl.u32 %v1122, 7
      %v1124 = vsub.s32 1, %v1123
      %v1125 = vrot.slane %v1112, %v1124
      %v1128 = vmul.f32 %v1115, %v1121
      %v1129 = vmul.f32 %v1115, %v1125
      %s1130 = scalar_lea.vmem %s177, 2
      %v1131 = vld [vmem:[%s1130] ss:$8 sm:$0x3]
      %1132 = vset.pattern.permute.xlu0 2
      %1133 = vperm.xlu0 %1132, %v257
      %v1134 = vpop.permute.xlu0 %1133
      %v1137 = vlaneseq
      %v1138 = vshrl.u32 %v1137, 7
      %v1139 = vsub.s32 0, %v1138
      %v1140 = vrot.slane %v1131, %v1139
      %v1141 = vlaneseq
      %v1142 = vshrl.u32 %v1141, 7
      %v1143 = vsub.s32 1, %v1142
      %v1144 = vrot.slane %v1131, %v1143
      %v1147 = vmul.f32 %v1134, %v1140
      %v1148 = vmul.f32 %v1134, %v1144
      %v1149 = vadd.f32 %v1128, %v1147
      %v1150 = vadd.f32 %v1129, %v1148
      %v1151 = vmul.f32 %v1108, %v1149
      %v1152 = vmul.f32 %v1110, %v1150
      %s1153 = sld [smem:[#allocation6 + $0x6]]
      %v1154 = vstv %s1153
      %v1155 = vmul.f32 %v1154, %v1101
      %v1156 = vmul.f32 %v1154, %v1102
      %v1157 = vmul.f32 %v1155, 1.442695
      %v1158 = vpow.pop %v1157
      %v1159 = vmul.f32 %v1156, 1.442695
      %v1160 = vpow.pop %v1159
      %s1161 = scalar_lea.vmem %s169, 6
      %v1162 = vld [vmem:[%s1161] ss:$8 sm:$0x3]
      %1163 = vset.pattern.permute.xlu0 6
      %1164 = vperm.xlu0 %1163, %v236
      %v1165 = vpop.permute.xlu0 %1164
      %v1168 = vlaneseq
      %v1169 = vshrl.u32 %v1168, 7
      %v1170 = vsub.s32 0, %v1169
      %v1171 = vrot.slane %v1162, %v1170
      %v1172 = vlaneseq
      %v1173 = vshrl.u32 %v1172, 7
      %v1174 = vsub.s32 1, %v1173
      %v1175 = vrot.slane %v1162, %v1174
      %v1178 = vmul.f32 %v1165, %v1171
      %v1179 = vmul.f32 %v1165, %v1175
      %s1180 = scalar_lea.vmem %s177, 6
      %v1181 = vld [vmem:[%s1180] ss:$8 sm:$0x3]
      %1182 = vset.pattern.permute.xlu0 6
      %1183 = vperm.xlu0 %1182, %v257
      %v1184 = vpop.permute.xlu0 %1183
      %v1187 = vlaneseq
      %v1188 = vshrl.u32 %v1187, 7
      %v1189 = vsub.s32 0, %v1188
      %v1190 = vrot.slane %v1181, %v1189
      %v1191 = vlaneseq
      %v1192 = vshrl.u32 %v1191, 7
      %v1193 = vsub.s32 1, %v1192
      %v1194 = vrot.slane %v1181, %v1193
      %v1197 = vmul.f32 %v1184, %v1190
      %v1198 = vmul.f32 %v1184, %v1194
      %v1199 = vadd.f32 %v1178, %v1197
      %v1200 = vadd.f32 %v1179, %v1198
      %v1201 = vmul.f32 %v1158, %v1199
      %v1202 = vmul.f32 %v1160, %v1200
      %v1203 = vadd.f32 %v1151, %v1201
      %v1204 = vadd.f32 %v1152, %v1202
      %s1205 = sld [smem:[#allocation6 + $0xa]]
      %v1206 = vstv %s1205
      %v1207 = vmul.f32 %v1206, %v1101
      %v1208 = vmul.f32 %v1206, %v1102
      %v1209 = vmul.f32 %v1207, 1.442695
      %v1210 = vpow.pop %v1209
      %v1211 = vmul.f32 %v1208, 1.442695
      %v1212 = vpow.pop %v1211
      %s1213 = scalar_lea.vmem %s169, 18
      %v1214 = vld [vmem:[%s1213] ss:$8 sm:$0x3]
      %1215 = vset.pattern.permute.xlu0 10
      %1216 = vperm.xlu0 %1215, %v236
      %v1217 = vpop.permute.xlu0 %1216
      %v1220 = vlaneseq
      %v1221 = vshrl.u32 %v1220, 7
      %v1222 = vsub.s32 0, %v1221
      %v1223 = vrot.slane %v1214, %v1222
      %v1224 = vlaneseq
      %v1225 = vshrl.u32 %v1224, 7
      %v1226 = vsub.s32 1, %v1225
      %v1227 = vrot.slane %v1214, %v1226
      %v1230 = vmul.f32 %v1217, %v1223
      %v1231 = vmul.f32 %v1217, %v1227
      %s1232 = scalar_lea.vmem %s177, 18
      %v1233 = vld [vmem:[%s1232] ss:$8 sm:$0x3]
      %1234 = vset.pattern.permute.xlu0 10
      %1235 = vperm.xlu0 %1234, %v257
      %v1236 = vpop.permute.xlu0 %1235
      %v1239 = vlaneseq
      %v1240 = vshrl.u32 %v1239, 7
      %v1241 = vsub.s32 0, %v1240
      %v1242 = vrot.slane %v1233, %v1241
      %v1243 = vlaneseq
      %v1244 = vshrl.u32 %v1243, 7
      %v1245 = vsub.s32 1, %v1244
      %v1246 = vrot.slane %v1233, %v1245
      %v1249 = vmul.f32 %v1236, %v1242
      %v1250 = vmul.f32 %v1236, %v1246
      %v1251 = vadd.f32 %v1230, %v1249
      %v1252 = vadd.f32 %v1231, %v1250
      %v1253 = vmul.f32 %v1210, %v1251
      %v1254 = vmul.f32 %v1212, %v1252
      %v1255 = vadd.f32 %v1203, %v1253
      %v1256 = vadd.f32 %v1204, %v1254
      %s1257 = sld [smem:[#allocation6 + $0xe]]
      %v1258 = vstv %s1257
      %v1259 = vmul.f32 %v1258, %v1101
      %v1260 = vmul.f32 %v1258, %v1102
      %v1261 = vmul.f32 %v1259, 1.442695
      %v1262 = vpow.pop %v1261
      %v1263 = vmul.f32 %v1260, 1.442695
      %v1264 = vpow.pop %v1263
      %s1265 = scalar_lea.vmem %s169, 22
      %v1266 = vld [vmem:[%s1265] ss:$8 sm:$0x3]
      %1267 = vset.pattern.permute.xlu0 14
      %1268 = vperm.xlu0 %1267, %v236
      %v1269 = vpop.permute.xlu0 %1268
      %v1272 = vlaneseq
      %v1273 = vshrl.u32 %v1272, 7
      %v1274 = vsub.s32 0, %v1273
      %v1275 = vrot.slane %v1266, %v1274
      %v1276 = vlaneseq
      %v1277 = vshrl.u32 %v1276, 7
      %v1278 = vsub.s32 1, %v1277
      %v1279 = vrot.slane %v1266, %v1278
      %v1282 = vmul.f32 %v1269, %v1275
      %v1283 = vmul.f32 %v1269, %v1279
      %s1284 = scalar_lea.vmem %s177, 22
      %v1285 = vld [vmem:[%s1284] ss:$8 sm:$0x3]
      %1286 = vset.pattern.permute.xlu0 14
      %1287 = vperm.xlu0 %1286, %v257
      %v1288 = vpop.permute.xlu0 %1287
      %v1291 = vlaneseq
      %v1292 = vshrl.u32 %v1291, 7
      %v1293 = vsub.s32 0, %v1292
      %v1294 = vrot.slane %v1285, %v1293
      %v1295 = vlaneseq
      %v1296 = vshrl.u32 %v1295, 7
      %v1297 = vsub.s32 1, %v1296
      %v1298 = vrot.slane %v1285, %v1297
      %v1301 = vmul.f32 %v1288, %v1294
      %v1302 = vmul.f32 %v1288, %v1298
      %v1303 = vadd.f32 %v1282, %v1301
      %v1304 = vadd.f32 %v1283, %v1302
      %v1305 = vmul.f32 %v1262, %v1303
      %v1306 = vmul.f32 %v1264, %v1304
      %v1307 = vadd.f32 %v1255, %v1305
      %v1308 = vadd.f32 %v1256, %v1306
      %s1309 = sld [smem:[#allocation6 + $0x12]]
      %v1310 = vstv %s1309
      %v1311 = vmul.f32 %v1310, %v1101
      %v1312 = vmul.f32 %v1310, %v1102
      %v1313 = vmul.f32 %v1311, 1.442695
      %v1314 = vpow.pop %v1313
      %v1315 = vmul.f32 %v1312, 1.442695
      %v1316 = vpow.pop %v1315
      %s1317 = scalar_lea.vmem %s169, 34
      %v1318 = vld [vmem:[%s1317] ss:$8 sm:$0x3]
      %1319 = vset.pattern.permute.xlu0 18
      %1320 = vperm.xlu0 %1319, %v236
      %v1321 = vpop.permute.xlu0 %1320
      %v1324 = vlaneseq
      %v1325 = vshrl.u32 %v1324, 7
      %v1326 = vsub.s32 0, %v1325
      %v1327 = vrot.slane %v1318, %v1326
      %v1328 = vlaneseq
      %v1329 = vshrl.u32 %v1328, 7
      %v1330 = vsub.s32 1, %v1329
      %v1331 = vrot.slane %v1318, %v1330
      %v1334 = vmul.f32 %v1321, %v1327
      %v1335 = vmul.f32 %v1321, %v1331
      %s1336 = scalar_lea.vmem %s177, 34
      %v1337 = vld [vmem:[%s1336] ss:$8 sm:$0x3]
      %1338 = vset.pattern.permute.xlu0 18
      %1339 = vperm.xlu0 %1338, %v257
      %v1340 = vpop.permute.xlu0 %1339
      %v1343 = vlaneseq
      %v1344 = vshrl.u32 %v1343, 7
      %v1345 = vsub.s32 0, %v1344
      %v1346 = vrot.slane %v1337, %v1345
      %v1347 = vlaneseq
      %v1348 = vshrl.u32 %v1347, 7
      %v1349 = vsub.s32 1, %v1348
      %v1350 = vrot.slane %v1337, %v1349
      %v1353 = vmul.f32 %v1340, %v1346
      %v1354 = vmul.f32 %v1340, %v1350
      %v1355 = vadd.f32 %v1334, %v1353
      %v1356 = vadd.f32 %v1335, %v1354
      %v1357 = vmul.f32 %v1314, %v1355
      %v1358 = vmul.f32 %v1316, %v1356
      %v1359 = vadd.f32 %v1307, %v1357
      %v1360 = vadd.f32 %v1308, %v1358
      %s1361 = sld [smem:[#allocation6 + $0x16]]
      %v1362 = vstv %s1361
      %v1363 = vmul.f32 %v1362, %v1101
      %v1364 = vmul.f32 %v1362, %v1102
      %v1365 = vmul.f32 %v1363, 1.442695
      %v1366 = vpow.pop %v1365
      %v1367 = vmul.f32 %v1364, 1.442695
      %v1368 = vpow.pop %v1367
      %s1369 = scalar_lea.vmem %s169, 38
      %v1370 = vld [vmem:[%s1369] ss:$8 sm:$0x3]
      %1371 = vset.pattern.permute.xlu0 22
      %1372 = vperm.xlu0 %1371, %v236
      %v1373 = vpop.permute.xlu0 %1372
      %v1376 = vlaneseq
      %v1377 = vshrl.u32 %v1376, 7
      %v1378 = vsub.s32 0, %v1377
      %v1379 = vrot.slane %v1370, %v1378
      %v1380 = vlaneseq
      %v1381 = vshrl.u32 %v1380, 7
      %v1382 = vsub.s32 1, %v1381
      %v1383 = vrot.slane %v1370, %v1382
      %v1386 = vmul.f32 %v1373, %v1379
      %v1387 = vmul.f32 %v1373, %v1383
      %s1388 = scalar_lea.vmem %s177, 38
      %v1389 = vld [vmem:[%s1388] ss:$8 sm:$0x3]
      %1390 = vset.pattern.permute.xlu0 22
      %1391 = vperm.xlu0 %1390, %v257
      %v1392 = vpop.permute.xlu0 %1391
      %v1395 = vlaneseq
      %v1396 = vshrl.u32 %v1395, 7
      %v1397 = vsub.s32 0, %v1396
      %v1398 = vrot.slane %v1389, %v1397
      %v1399 = vlaneseq
      %v1400 = vshrl.u32 %v1399, 7
      %v1401 = vsub.s32 1, %v1400
      %v1402 = vrot.slane %v1389, %v1401
      %v1405 = vmul.f32 %v1392, %v1398
      %v1406 = vmul.f32 %v1392, %v1402
      %v1407 = vadd.f32 %v1386, %v1405
      %v1408 = vadd.f32 %v1387, %v1406
      %v1409 = vmul.f32 %v1366, %v1407
      %v1410 = vmul.f32 %v1368, %v1408
      %v1411 = vadd.f32 %v1359, %v1409
      %v1412 = vadd.f32 %v1360, %v1410
      %s1413 = sld [smem:[#allocation6 + $0x1a]]
      %v1414 = vstv %s1413
      %v1415 = vmul.f32 %v1414, %v1101
      %v1416 = vmul.f32 %v1414, %v1102
      %v1417 = vmul.f32 %v1415, 1.442695
      %v1418 = vpow.pop %v1417
      %v1419 = vmul.f32 %v1416, 1.442695
      %v1420 = vpow.pop %v1419
      %s1421 = scalar_lea.vmem %s169, 50
      %v1422 = vld [vmem:[%s1421] ss:$8 sm:$0x3]
      %1423 = vset.pattern.permute.xlu0 26
      %1424 = vperm.xlu0 %1423, %v236
      %v1425 = vpop.permute.xlu0 %1424
      %v1428 = vlaneseq
      %v1429 = vshrl.u32 %v1428, 7
      %v1430 = vsub.s32 0, %v1429
      %v1431 = vrot.slane %v1422, %v1430
      %v1432 = vlaneseq
      %v1433 = vshrl.u32 %v1432, 7
      %v1434 = vsub.s32 1, %v1433
      %v1435 = vrot.slane %v1422, %v1434
      %v1438 = vmul.f32 %v1425, %v1431
      %v1439 = vmul.f32 %v1425, %v1435
      %s1440 = scalar_lea.vmem %s177, 50
      %v1441 = vld [vmem:[%s1440] ss:$8 sm:$0x3]
      %1442 = vset.pattern.permute.xlu0 26
      %1443 = vperm.xlu0 %1442, %v257
      %v1444 = vpop.permute.xlu0 %1443
      %v1447 = vlaneseq
      %v1448 = vshrl.u32 %v1447, 7
      %v1449 = vsub.s32 0, %v1448
      %v1450 = vrot.slane %v1441, %v1449
      %v1451 = vlaneseq
      %v1452 = vshrl.u32 %v1451, 7
      %v1453 = vsub.s32 1, %v1452
      %v1454 = vrot.slane %v1441, %v1453
      %v1457 = vmul.f32 %v1444, %v1450
      %v1458 = vmul.f32 %v1444, %v1454
      %v1459 = vadd.f32 %v1438, %v1457
      %v1460 = vadd.f32 %v1439, %v1458
      %v1461 = vmul.f32 %v1418, %v1459
      %v1462 = vmul.f32 %v1420, %v1460
      %v1463 = vadd.f32 %v1411, %v1461
      %v1464 = vadd.f32 %v1412, %v1462
      %s1465 = sld [smem:[#allocation6 + $0x1e]]
      %v1466 = vstv %s1465
      %v1467 = vmul.f32 %v1466, %v1101
      %v1468 = vmul.f32 %v1466, %v1102
      %v1469 = vmul.f32 %v1467, 1.442695
      %v1470 = vpow.pop %v1469
      %v1471 = vmul.f32 %v1468, 1.442695
      %v1472 = vpow.pop %v1471
      %s1473 = scalar_lea.vmem %s169, 54
      %v1474 = vld [vmem:[%s1473] ss:$8 sm:$0x3]
      %1475 = vset.pattern.permute.xlu0 30
      %1476 = vperm.xlu0 %1475, %v236
      %v1477 = vpop.permute.xlu0 %1476
      %v1480 = vlaneseq
      %v1481 = vshrl.u32 %v1480, 7
      %v1482 = vsub.s32 0, %v1481
      %v1483 = vrot.slane %v1474, %v1482
      %v1484 = vlaneseq
      %v1485 = vshrl.u32 %v1484, 7
      %v1486 = vsub.s32 1, %v1485
      %v1487 = vrot.slane %v1474, %v1486
      %v1490 = vmul.f32 %v1477, %v1483
      %v1491 = vmul.f32 %v1477, %v1487
      %s1492 = scalar_lea.vmem %s177, 54
      %v1493 = vld [vmem:[%s1492] ss:$8 sm:$0x3]
      %1494 = vset.pattern.permute.xlu0 30
      %1495 = vperm.xlu0 %1494, %v257
      %v1496 = vpop.permute.xlu0 %1495
      %v1499 = vlaneseq
      %v1500 = vshrl.u32 %v1499, 7
      %v1501 = vsub.s32 0, %v1500
      %v1502 = vrot.slane %v1493, %v1501
      %v1503 = vlaneseq
      %v1504 = vshrl.u32 %v1503, 7
      %v1505 = vsub.s32 1, %v1504
      %v1506 = vrot.slane %v1493, %v1505
      %v1509 = vmul.f32 %v1496, %v1502
      %v1510 = vmul.f32 %v1496, %v1506
      %v1511 = vadd.f32 %v1490, %v1509
      %v1512 = vadd.f32 %v1491, %v1510
      %v1513 = vmul.f32 %v1470, %v1511
      %v1514 = vmul.f32 %v1472, %v1512
      %v1515 = vadd.f32 %v1463, %v1513
      %v1516 = vadd.f32 %v1464, %v1514
      %v1517 = vmul.f32 %v1080, %v1515
      %v1518 = vmul.f32 %v1081, %v1516
      %s1519 = scalar_lea.vmem %s145, 3
      %v1520 = vld [vmem:[%s1519] ss:$4 sm:$0x3]
      %1521 = vset.pattern.permute.xlu0 3
      %1522 = vperm.xlu0 %1521, %v205
      %v1523 = vpop.permute.xlu0 %1522
      %v1526 = vlaneseq
      %v1527 = vshrl.u32 %v1526, 7
      %v1528 = vsub.s32 0, %v1527
      %v1529 = vrot.slane %v1520, %v1528
      %v1530 = vlaneseq
      %v1531 = vshrl.u32 %v1530, 7
      %v1532 = vsub.s32 1, %v1531
      %v1533 = vrot.slane %v1520, %v1532
      %v1536 = vsub.f32 %v1523, %v1529
      %v1537 = vsub.f32 %v1523, %v1533
      %v1538 = vmul.f32 %v1536, %v1536
      %v1539 = vmul.f32 %v1537, %v1537
      %s1540 = sld [smem:[#allocation6 + $0x3]]
      %v1541 = vstv %s1540
      %v1542 = vmul.f32 %v1541, %v1538
      %v1543 = vmul.f32 %v1541, %v1539
      %v1544 = vmul.f32 %v1542, 1.442695
      %v1545 = vpow.pop %v1544
      %v1546 = vmul.f32 %v1543, 1.442695
      %v1547 = vpow.pop %v1546
      %s1548 = scalar_lea.vmem %s169, 3
      %v1549 = vld [vmem:[%s1548] ss:$8 sm:$0x3]
      %1550 = vset.pattern.permute.xlu0 3
      %1551 = vperm.xlu0 %1550, %v236
      %v1552 = vpop.permute.xlu0 %1551
      %v1555 = vlaneseq
      %v1556 = vshrl.u32 %v1555, 7
      %v1557 = vsub.s32 0, %v1556
      %v1558 = vrot.slane %v1549, %v1557
      %v1559 = vlaneseq
      %v1560 = vshrl.u32 %v1559, 7
      %v1561 = vsub.s32 1, %v1560
      %v1562 = vrot.slane %v1549, %v1561
      %v1565 = vmul.f32 %v1552, %v1558
      %v1566 = vmul.f32 %v1552, %v1562
      %s1567 = scalar_lea.vmem %s177, 3
      %v1568 = vld [vmem:[%s1567] ss:$8 sm:$0x3]
      %1569 = vset.pattern.permute.xlu0 3
      %1570 = vperm.xlu0 %1569, %v257
      %v1571 = vpop.permute.xlu0 %1570
      %v1574 = vlaneseq
      %v1575 = vshrl.u32 %v1574, 7
      %v1576 = vsub.s32 0, %v1575
      %v1577 = vrot.slane %v1568, %v1576
      %v1578 = vlaneseq
      %v1579 = vshrl.u32 %v1578, 7
      %v1580 = vsub.s32 1, %v1579
      %v1581 = vrot.slane %v1568, %v1580
      %v1584 = vmul.f32 %v1571, %v1577
      %v1585 = vmul.f32 %v1571, %v1581
      %v1586 = vadd.f32 %v1565, %v1584
      %v1587 = vadd.f32 %v1566, %v1585
      %v1588 = vmul.f32 %v1545, %v1586
      %v1589 = vmul.f32 %v1547, %v1587
      %s1590 = sld [smem:[#allocation6 + $0x7]]
      %v1591 = vstv %s1590
      %v1592 = vmul.f32 %v1591, %v1538
      %v1593 = vmul.f32 %v1591, %v1539
      %v1594 = vmul.f32 %v1592, 1.442695
      %v1595 = vpow.pop %v1594
      %v1596 = vmul.f32 %v1593, 1.442695
      %v1597 = vpow.pop %v1596
      %s1598 = scalar_lea.vmem %s169, 7
      %v1599 = vld [vmem:[%s1598] ss:$8 sm:$0x3]
      %1600 = vset.pattern.permute.xlu0 7
      %1601 = vperm.xlu0 %1600, %v236
      %v1602 = vpop.permute.xlu0 %1601
      %v1605 = vlaneseq
      %v1606 = vshrl.u32 %v1605, 7
      %v1607 = vsub.s32 0, %v1606
      %v1608 = vrot.slane %v1599, %v1607
      %v1609 = vlaneseq
      %v1610 = vshrl.u32 %v1609, 7
      %v1611 = vsub.s32 1, %v1610
      %v1612 = vrot.slane %v1599, %v1611
      %v1615 = vmul.f32 %v1602, %v1608
      %v1616 = vmul.f32 %v1602, %v1612
      %s1617 = scalar_lea.vmem %s177, 7
      %v1618 = vld [vmem:[%s1617] ss:$8 sm:$0x3]
      %1619 = vset.pattern.permute.xlu0 7
      %1620 = vperm.xlu0 %1619, %v257
      %v1621 = vpop.permute.xlu0 %1620
      %v1624 = vlaneseq
      %v1625 = vshrl.u32 %v1624, 7
      %v1626 = vsub.s32 0, %v1625
      %v1627 = vrot.slane %v1618, %v1626
      %v1628 = vlaneseq
      %v1629 = vshrl.u32 %v1628, 7
      %v1630 = vsub.s32 1, %v1629
      %v1631 = vrot.slane %v1618, %v1630
      %v1634 = vmul.f32 %v1621, %v1627
      %v1635 = vmul.f32 %v1621, %v1631
      %v1636 = vadd.f32 %v1615, %v1634
      %v1637 = vadd.f32 %v1616, %v1635
      %v1638 = vmul.f32 %v1595, %v1636
      %v1639 = vmul.f32 %v1597, %v1637
      %v1640 = vadd.f32 %v1588, %v1638
      %v1641 = vadd.f32 %v1589, %v1639
      %s1642 = sld [smem:[#allocation6 + $0xb]]
      %v1643 = vstv %s1642
      %v1644 = vmul.f32 %v1643, %v1538
      %v1645 = vmul.f32 %v1643, %v1539
      %v1646 = vmul.f32 %v1644, 1.442695
      %v1647 = vpow.pop %v1646
      %v1648 = vmul.f32 %v1645, 1.442695
      %v1649 = vpow.pop %v1648
      %s1650 = scalar_lea.vmem %s169, 19
      %v1651 = vld [vmem:[%s1650] ss:$8 sm:$0x3]
      %1652 = vset.pattern.permute.xlu0 11
      %1653 = vperm.xlu0 %1652, %v236
      %v1654 = vpop.permute.xlu0 %1653
      %v1657 = vlaneseq
      %v1658 = vshrl.u32 %v1657, 7
      %v1659 = vsub.s32 0, %v1658
      %v1660 = vrot.slane %v1651, %v1659
      %v1661 = vlaneseq
      %v1662 = vshrl.u32 %v1661, 7
      %v1663 = vsub.s32 1, %v1662
      %v1664 = vrot.slane %v1651, %v1663
      %v1667 = vmul.f32 %v1654, %v1660
      %v1668 = vmul.f32 %v1654, %v1664
      %s1669 = scalar_lea.vmem %s177, 19
      %v1670 = vld [vmem:[%s1669] ss:$8 sm:$0x3]
      %1671 = vset.pattern.permute.xlu0 11
      %1672 = vperm.xlu0 %1671, %v257
      %v1673 = vpop.permute.xlu0 %1672
      %v1676 = vlaneseq
      %v1677 = vshrl.u32 %v1676, 7
      %v1678 = vsub.s32 0, %v1677
      %v1679 = vrot.slane %v1670, %v1678
      %v1680 = vlaneseq
      %v1681 = vshrl.u32 %v1680, 7
      %v1682 = vsub.s32 1, %v1681
      %v1683 = vrot.slane %v1670, %v1682
      %v1686 = vmul.f32 %v1673, %v1679
      %v1687 = vmul.f32 %v1673, %v1683
      %v1688 = vadd.f32 %v1667, %v1686
      %v1689 = vadd.f32 %v1668, %v1687
      %v1690 = vmul.f32 %v1647, %v1688
      %v1691 = vmul.f32 %v1649, %v1689
      %v1692 = vadd.f32 %v1640, %v1690
      %v1693 = vadd.f32 %v1641, %v1691
      %s1694 = sld [smem:[#allocation6 + $0xf]]
      %v1695 = vstv %s1694
      %v1696 = vmul.f32 %v1695, %v1538
      %v1697 = vmul.f32 %v1695, %v1539
      %v1698 = vmul.f32 %v1696, 1.442695
      %v1699 = vpow.pop %v1698
      %v1700 = vmul.f32 %v1697, 1.442695
      %v1701 = vpow.pop %v1700
      %s1702 = scalar_lea.vmem %s169, 23
      %v1703 = vld [vmem:[%s1702] ss:$8 sm:$0x3]
      %1704 = vset.pattern.permute.xlu0 15
      %1705 = vperm.xlu0 %1704, %v236
      %v1706 = vpop.permute.xlu0 %1705
      %v1709 = vlaneseq
      %v1710 = vshrl.u32 %v1709, 7
      %v1711 = vsub.s32 0, %v1710
      %v1712 = vrot.slane %v1703, %v1711
      %v1713 = vlaneseq
      %v1714 = vshrl.u32 %v1713, 7
      %v1715 = vsub.s32 1, %v1714
      %v1716 = vrot.slane %v1703, %v1715
      %v1719 = vmul.f32 %v1706, %v1712
      %v1720 = vmul.f32 %v1706, %v1716
      %s1721 = scalar_lea.vmem %s177, 23
      %v1722 = vld [vmem:[%s1721] ss:$8 sm:$0x3]
      %1723 = vset.pattern.permute.xlu0 15
      %1724 = vperm.xlu0 %1723, %v257
      %v1725 = vpop.permute.xlu0 %1724
      %v1728 = vlaneseq
      %v1729 = vshrl.u32 %v1728, 7
      %v1730 = vsub.s32 0, %v1729
      %v1731 = vrot.slane %v1722, %v1730
      %v1732 = vlaneseq
      %v1733 = vshrl.u32 %v1732, 7
      %v1734 = vsub.s32 1, %v1733
      %v1735 = vrot.slane %v1722, %v1734
      %v1738 = vmul.f32 %v1725, %v1731
      %v1739 = vmul.f32 %v1725, %v1735
      %v1740 = vadd.f32 %v1719, %v1738
      %v1741 = vadd.f32 %v1720, %v1739
      %v1742 = vmul.f32 %v1699, %v1740
      %v1743 = vmul.f32 %v1701, %v1741
      %v1744 = vadd.f32 %v1692, %v1742
      %v1745 = vadd.f32 %v1693, %v1743
      %s1746 = sld [smem:[#allocation6 + $0x13]]
      %v1747 = vstv %s1746
      %v1748 = vmul.f32 %v1747, %v1538
      %v1749 = vmul.f32 %v1747, %v1539
      %v1750 = vmul.f32 %v1748, 1.442695
      %v1751 = vpow.pop %v1750
      %v1752 = vmul.f32 %v1749, 1.442695
      %v1753 = vpow.pop %v1752
      %s1754 = scalar_lea.vmem %s169, 35
      %v1755 = vld [vmem:[%s1754] ss:$8 sm:$0x3]
      %1756 = vset.pattern.permute.xlu0 19
      %1757 = vperm.xlu0 %1756, %v236
      %v1758 = vpop.permute.xlu0 %1757
      %v1761 = vlaneseq
      %v1762 = vshrl.u32 %v1761, 7
      %v1763 = vsub.s32 0, %v1762
      %v1764 = vrot.slane %v1755, %v1763
      %v1765 = vlaneseq
      %v1766 = vshrl.u32 %v1765, 7
      %v1767 = vsub.s32 1, %v1766
      %v1768 = vrot.slane %v1755, %v1767
      %v1771 = vmul.f32 %v1758, %v1764
      %v1772 = vmul.f32 %v1758, %v1768
      %s1773 = scalar_lea.vmem %s177, 35
      %v1774 = vld [vmem:[%s1773] ss:$8 sm:$0x3]
      %1775 = vset.pattern.permute.xlu0 19
      %1776 = vperm.xlu0 %1775, %v257
      %v1777 = vpop.permute.xlu0 %1776
      %v1780 = vlaneseq
      %v1781 = vshrl.u32 %v1780, 7
      %v1782 = vsub.s32 0, %v1781
      %v1783 = vrot.slane %v1774, %v1782
      %v1784 = vlaneseq
      %v1785 = vshrl.u32 %v1784, 7
      %v1786 = vsub.s32 1, %v1785
      %v1787 = vrot.slane %v1774, %v1786
      %v1790 = vmul.f32 %v1777, %v1783
      %v1791 = vmul.f32 %v1777, %v1787
      %v1792 = vadd.f32 %v1771, %v1790
      %v1793 = vadd.f32 %v1772, %v1791
      %v1794 = vmul.f32 %v1751, %v1792
      %v1795 = vmul.f32 %v1753, %v1793
      %v1796 = vadd.f32 %v1744, %v1794
      %v1797 = vadd.f32 %v1745, %v1795
      %s1798 = sld [smem:[#allocation6 + $0x17]]
      %v1799 = vstv %s1798
      %v1800 = vmul.f32 %v1799, %v1538
      %v1801 = vmul.f32 %v1799, %v1539
      %v1802 = vmul.f32 %v1800, 1.442695
      %v1803 = vpow.pop %v1802
      %v1804 = vmul.f32 %v1801, 1.442695
      %v1805 = vpow.pop %v1804
      %s1806 = scalar_lea.vmem %s169, 39
      %v1807 = vld [vmem:[%s1806] ss:$8 sm:$0x3]
      %1808 = vset.pattern.permute.xlu0 23
      %1809 = vperm.xlu0 %1808, %v236
      %v1810 = vpop.permute.xlu0 %1809
      %v1813 = vlaneseq
      %v1814 = vshrl.u32 %v1813, 7
      %v1815 = vsub.s32 0, %v1814
      %v1816 = vrot.slane %v1807, %v1815
      %v1817 = vlaneseq
      %v1818 = vshrl.u32 %v1817, 7
      %v1819 = vsub.s32 1, %v1818
      %v1820 = vrot.slane %v1807, %v1819
      %v1823 = vmul.f32 %v1810, %v1816
      %v1824 = vmul.f32 %v1810, %v1820
      %s1825 = scalar_lea.vmem %s177, 39
      %v1826 = vld [vmem:[%s1825] ss:$8 sm:$0x3]
      %1827 = vset.pattern.permute.xlu0 23
      %1828 = vperm.xlu0 %1827, %v257
      %v1829 = vpop.permute.xlu0 %1828
      %v1832 = vlaneseq
      %v1833 = vshrl.u32 %v1832, 7
      %v1834 = vsub.s32 0, %v1833
      %v1835 = vrot.slane %v1826, %v1834
      %v1836 = vlaneseq
      %v1837 = vshrl.u32 %v1836, 7
      %v1838 = vsub.s32 1, %v1837
      %v1839 = vrot.slane %v1826, %v1838
      %v1842 = vmul.f32 %v1829, %v1835
      %v1843 = vmul.f32 %v1829, %v1839
      %v1844 = vadd.f32 %v1823, %v1842
      %v1845 = vadd.f32 %v1824, %v1843
      %v1846 = vmul.f32 %v1803, %v1844
      %v1847 = vmul.f32 %v1805, %v1845
      %v1848 = vadd.f32 %v1796, %v1846
      %v1849 = vadd.f32 %v1797, %v1847
      %s1850 = sld [smem:[#allocation6 + $0x1b]]
      %v1851 = vstv %s1850
      %v1852 = vmul.f32 %v1851, %v1538
      %v1853 = vmul.f32 %v1851, %v1539
      %v1854 = vmul.f32 %v1852, 1.442695
      %v1855 = vpow.pop %v1854
      %v1856 = vmul.f32 %v1853, 1.442695
      %v1857 = vpow.pop %v1856
      %s1858 = scalar_lea.vmem %s169, 51
      %v1859 = vld [vmem:[%s1858] ss:$8 sm:$0x3]
      %1860 = vset.pattern.permute.xlu0 27
      %1861 = vperm.xlu0 %1860, %v236
      %v1862 = vpop.permute.xlu0 %1861
      %v1865 = vlaneseq
      %v1866 = vshrl.u32 %v1865, 7
      %v1867 = vsub.s32 0, %v1866
      %v1868 = vrot.slane %v1859, %v1867
      %v1869 = vlaneseq
      %v1870 = vshrl.u32 %v1869, 7
      %v1871 = vsub.s32 1, %v1870
      %v1872 = vrot.slane %v1859, %v1871
      %v1875 = vmul.f32 %v1862, %v1868
      %v1876 = vmul.f32 %v1862, %v1872
      %s1877 = scalar_lea.vmem %s177, 51
      %v1878 = vld [vmem:[%s1877] ss:$8 sm:$0x3]
      %1879 = vset.pattern.permute.xlu0 27
      %1880 = vperm.xlu0 %1879, %v257
      %v1881 = vpop.permute.xlu0 %1880
      %v1884 = vlaneseq
      %v1885 = vshrl.u32 %v1884, 7
      %v1886 = vsub.s32 0, %v1885
      %v1887 = vrot.slane %v1878, %v1886
      %v1888 = vlaneseq
      %v1889 = vshrl.u32 %v1888, 7
      %v1890 = vsub.s32 1, %v1889
      %v1891 = vrot.slane %v1878, %v1890
      %v1894 = vmul.f32 %v1881, %v1887
      %v1895 = vmul.f32 %v1881, %v1891
      %v1896 = vadd.f32 %v1875, %v1894
      %v1897 = vadd.f32 %v1876, %v1895
      %v1898 = vmul.f32 %v1855, %v1896
      %v1899 = vmul.f32 %v1857, %v1897
      %v1900 = vadd.f32 %v1848, %v1898
      %v1901 = vadd.f32 %v1849, %v1899
      %s1902 = sld [smem:[#allocation6 + $0x1f]]
      %v1903 = vstv %s1902
      %v1904 = vmul.f32 %v1903, %v1538
      %v1905 = vmul.f32 %v1903, %v1539
      %v1906 = vmul.f32 %v1904, 1.442695
      %v1907 = vpow.pop %v1906
      %v1908 = vmul.f32 %v1905, 1.442695
      %v1909 = vpow.pop %v1908
      %s1910 = scalar_lea.vmem %s169, 55
      %v1911 = vld [vmem:[%s1910] ss:$8 sm:$0x3]
      %1912 = vset.pattern.permute.xlu0 31
      %1913 = vperm.xlu0 %1912, %v236
      %v1914 = vpop.permute.xlu0 %1913
      %v1917 = vlaneseq
      %v1918 = vshrl.u32 %v1917, 7
      %v1919 = vsub.s32 0, %v1918
      %v1920 = vrot.slane %v1911, %v1919
      %v1921 = vlaneseq
      %v1922 = vshrl.u32 %v1921, 7
      %v1923 = vsub.s32 1, %v1922
      %v1924 = vrot.slane %v1911, %v1923
      %v1927 = vmul.f32 %v1914, %v1920
      %v1928 = vmul.f32 %v1914, %v1924
      %s1929 = scalar_lea.vmem %s177, 55
      %v1930 = vld [vmem:[%s1929] ss:$8 sm:$0x3]
      %1931 = vset.pattern.permute.xlu0 31
      %1932 = vperm.xlu0 %1931, %v257
      %v1933 = vpop.permute.xlu0 %1932
      %v1936 = vlaneseq
      %v1937 = vshrl.u32 %v1936, 7
      %v1938 = vsub.s32 0, %v1937
      %v1939 = vrot.slane %v1930, %v1938
      %v1940 = vlaneseq
      %v1941 = vshrl.u32 %v1940, 7
      %v1942 = vsub.s32 1, %v1941
      %v1943 = vrot.slane %v1930, %v1942
      %v1946 = vmul.f32 %v1933, %v1939
      %v1947 = vmul.f32 %v1933, %v1943
      %v1948 = vadd.f32 %v1927, %v1946
      %v1949 = vadd.f32 %v1928, %v1947
      %v1950 = vmul.f32 %v1907, %v1948
      %v1951 = vmul.f32 %v1909, %v1949
      %v1952 = vadd.f32 %v1900, %v1950
      %v1953 = vadd.f32 %v1901, %v1951
      %v1954 = vmul.f32 %v1517, %v1952
      %v1955 = vmul.f32 %v1518, %v1953
      %s1956 = sadd.s32 %s185, %s203
      %v1957 = vstv %s1956
      %v1958 = vadd.s32 %v196, %v1957
      %vm1959 = vcmp.eq.s32.totalorder %v1958, %v193
      %vm1960 = vcmp.eq.s32.totalorder %v1958, %v194
      %v1961 = vstv %s188
      %v1962 = vadd.f32 %v1954, %v1961
      %v1963 = vadd.f32 %v1955, %v1961
      %v1964 = vsel %vm1959, %v1962, %v1954
      %v1965 = vsel %vm1960, %v1963, %v1955
      %s1966 = sshra.s32 %s203, 3
      %s1967 = sand.u32 %s203, 7
      %s1968 = smul.u32 %s1966, 2
      %s1969 = smul.addr %s1968, 8
      %s1970 = scalar_lea.vmem [#allocation9], %s1969
      %1971 = vst [vmem:[%s1970] sm:$0xff] %v1964
      %1972 = vst [vmem:[%s1970 + $0x8] sm:$0xff] %v1965
    $region42: #{tpu_custom_call.1} parent=1 // loop_footer
      %s202 = sadd.s32 1, %s198
    $region43: #{tpu_custom_call.1} parent=1 // loop_footer_branch
      %197 = sbr.rel target = $region39
    $region44: #{tpu_custom_call.1} parent=1 // loop_exit
      _
    // Predicated region
    $region45: #{tpu_custom_call.1} parent=1 // pred_check
      _
    $region46: #{tpu_custom_call.1} parent=1 // pred_check_branch
      %1974 = sbr.rel (0) target = $region48
    $region47: #{tpu_custom_call.1} parent=1 // pred_region
      %s1975 = sld [smem:[#allocation3]]
      %s1976 = sld [smem:[#allocation4]]
      %s1977 = smul.u32 32, %s1975
      %s1978 = smul.u32 2, %s1976
      %s1980 = ssub.s32 8192, 8192
      %1981 = vsyncadd [#allocation7], %s1980
      %s1982 = smul.addr %s1977, 2
      %s1983 = sadd.s32 %s1978, %s1982
      %s1984 = smul.addr %s1983, 128
      %s1985 = scalar_lea.hbm %s10, %s1984
      %s1986 = sshll.u32 [#allocation9], 4
      %s1987 = int_to_ptr.vmem [resolvable:$true] %s1986
      %1992 = dma.vmem_to_hbm [thread:$0]  %s1987, 8192, %s1985, [#allocation7], 256, 256, 16
    $region48: #{tpu_custom_call.1} parent=1 // pred_fallthru
      _
    // Predicated region
    $region49: #{tpu_custom_call.1} parent=1 // pred_check
      _
    $region50: #{tpu_custom_call.1} parent=1 // pred_check_branch
      %1994 = sbr.rel (0) target = $region52
    $region51: #{tpu_custom_call.1} parent=1 // pred_region
      %1995 = dma.done [#allocation7], 8192
    $region52: #{tpu_custom_call.1} parent=1 // pred_fallthru
      _
    %1996 = vsyncpa [#allocation7], 1
    %1997 = vsyncpa [#allocation8], 1

</llo_original>
